<compile_context>
chip_gen: v5e
topology: v5e:2x2
jax: 0.10.0
libtpu: 0.0.40
codegen_flags: <defaults>
</compile_context>

<pallas_src>
import functools

import jax
import jax.numpy as jnp
import numpy as np
from jax import lax
from jax.experimental import pallas as pl
from jax.experimental.pallas import tpu as pltpu

BN_EPS = 1e-5          # PyTorch BatchNorm1d default eps
LANE = 128
NEG_BIG = -1e30        # finite "-inf" for masking (avoids inf-inf NaNs)
ENC_MAX_TILE = 4096    # encoder vocab tile (streams W1)
DEC_MAX_TILE = 8192    # decode vocab tile (streams rho)


def _round_up(x, m):
    return (x + m - 1) // m * m


def _pad2(x, rows, cols, value=0.0):
    r, c = x.shape
    return jnp.pad(x, ((0, rows - r), (0, cols - c)), constant_values=value)


def _vocab_tiling(v, max_tile):
    """Lane-dense vocab tiling: n_tiles * tile >= v, tile <= max_tile, 128|tile."""
    v_pad = _round_up(v, LANE)
    n = pl.cdiv(v_pad, max_tile)
    tile = _round_up(pl.cdiv(v_pad, n), LANE)
    return n * tile, tile


def _vmem_limit_bytes():
    """~75% of physical VMEM, capped at 96 MiB (96 on v5e/v6e, 48 on v7x)."""
    cap = None
    try:
        cap = getattr(pltpu.get_tpu_info(), "vmem_capacity_bytes", None)
    except Exception:
        cap = None
    if not cap:
        cap = 64 * 1024 * 1024          # conservative fallback (v7x physical)
    return int(min(cap * 3 // 4, 96 * 1024 * 1024))


VMEM_LIMIT = _vmem_limit_bytes()


# ----------------------------------------------------------------------------
# Kernel 1: encoder.  Grid over V (reduction axis).  BN folded into W2 / the
# fused mu+logsigma head.  Weights bf16, accumulation f32.
# ----------------------------------------------------------------------------
def _encoder_kernel(x_ref, w1_ref, b1_ref, w2_ref, b2_ref, wh_ref, bh_ref,
                    theta_ref, kl_ref, acc_ref, *, num_topics):
    k = pl.program_id(0)

    @pl.when(k == 0)
    def _init():
        acc_ref[...] = jnp.zeros_like(acc_ref)

    # bows_tile (B, TV) bf16 @ W1_tile (TV, Hp) bf16 -> f32 accumulate.
    acc_ref[...] += jnp.dot(x_ref[...], w1_ref[...],
                            preferred_element_type=jnp.float32)

    @pl.when(k == pl.num_programs(0) - 1)
    def _finalize():
        # Linear1 bias + ReLU  (BN1 folded into W2/b2).
        h = jnp.maximum(acc_ref[...] + b1_ref[...], 0.0)
        # Linear2 (BN1-folded, bf16) + ReLU  (BN2 folded into the head).
        h = jnp.dot(h.astype(jnp.bfloat16), w2_ref[...],
                    preferred_element_type=jnp.float32) + b2_ref[...]
        h = jnp.maximum(h, 0.0)
        # Fused mu/logsigma head: (B, 2*Kp).
        z = jnp.dot(h.astype(jnp.bfloat16), wh_ref[...],
                    preferred_element_type=jnp.float32) + bh_ref[...]
        k_pad = z.shape[-1] // 2
        mu = z[:, :k_pad]
        ls = z[:, k_pad:]

        # KL: padded topic lanes contribute exactly 0 (mu=ls=0 there).
        kl_term = 1.0 + ls - mu * mu - jnp.exp(ls)                # (B, Kp)
        kl_per = -0.5 * jnp.sum(kl_term, axis=-1, keepdims=True)  # (B, 1)
        kl_ref[...] = jnp.mean(kl_per, axis=0, keepdims=True)     # (1, 1)

        # theta = softmax(mu) over the valid K lanes only (padded lanes -> 0).
        lane = lax.broadcasted_iota(jnp.int32, mu.shape, 1)
        mu_m = jnp.where(lane < num_topics, mu, NEG_BIG)
        mu_m = mu_m - jnp.max(mu_m, axis=-1, keepdims=True)
        e = jnp.exp(mu_m)
        theta_ref[...] = e / jnp.sum(e, axis=-1, keepdims=True)


def encode_and_theta(bows_n, W1, b1, W2f, b2f, Whf, bhf, *, num_topics, v_tile):
    B, V_pad = bows_n.shape
    H_pad = W1.shape[1]
    K2 = Whf.shape[1]
    K_pad = K2 // 2
    n_v = V_pad // v_tile

    kernel = functools.partial(_encoder_kernel, num_topics=num_topics)
    return pl.pallas_call(
        kernel,
        grid=(n_v,),
        in_specs=[
            pl.BlockSpec((B, v_tile), lambda k: (0, k)),        # bows tile (bf16)
            pl.BlockSpec((v_tile, H_pad), lambda k: (k, 0)),    # W1 tile (bf16)
            pl.BlockSpec((1, H_pad), lambda k: (0, 0)),         # b1 (f32, resident)
            pl.BlockSpec((H_pad, H_pad), lambda k: (0, 0)),     # W2 (bf16, BN-folded)
            pl.BlockSpec((1, H_pad), lambda k: (0, 0)),         # b2 (f32, BN-folded)
            pl.BlockSpec((H_pad, K2), lambda k: (0, 0)),        # fused head W (bf16)
            pl.BlockSpec((1, K2), lambda k: (0, 0)),            # fused head b (f32)
        ],
        out_specs=(
            pl.BlockSpec((B, K_pad), lambda k: (0, 0)),         # theta
            pl.BlockSpec((1, 1), lambda k: (0, 0)),             # kld
        ),
        out_shape=(
            jax.ShapeDtypeStruct((B, K_pad), jnp.float32),
            jax.ShapeDtypeStruct((1, 1), jnp.float32),
        ),
        scratch_shapes=[pltpu.VMEM((B, H_pad), jnp.float32)],   # h accumulator
        compiler_params=pltpu.CompilerParams(
            dimension_semantics=("arbitrary",),
            vmem_limit_bytes=VMEM_LIMIT),
    )(bows_n, W1, b1, W2f, b2f, Whf, bhf)


# ----------------------------------------------------------------------------
# Kernel 2: fused beta + decode + recon loss for BOTH vocabularies.
# grid = (2 vocabs [parallel], 2 passes, n_v tiles).
#   pass 0: stream rho tiles once, cache logits (alphas @ rho^T) in VMEM and
#           build per-topic online-softmax stats (max, masked sum).
#   pass 1: read the cached logits, normalize with approx reciprocal, do
#           theta @ beta, log, and accumulate the per-vocab scalar loss.
# Per-vocab tile counts are scalar-prefetched; dead tiles are clamped/skipped.
# ----------------------------------------------------------------------------
def _decode_kernel(vact_ref, ntile_ref, theta_ref, alpha_ref, rho_ref, bows_ref,
                   loss_ref, m_scr, l_scr, loss_scr, cache_ref,
                   *, v_tile, batch):
    w = pl.program_id(0)           # vocabulary index
    p = pl.program_id(1)           # pass index
    v = pl.program_id(2)           # vocab tile index
    n_v = pl.num_programs(2)
    active = v < ntile_ref[w]

    @pl.when(jnp.logical_and(p == 0, v == 0))
    def _init():
        m_scr[...] = jnp.full_like(m_scr, NEG_BIG)
        l_scr[...] = jnp.zeros_like(l_scr)
        loss_scr[...] = jnp.zeros_like(loss_scr)

    @pl.when(jnp.logical_and(p == 0, active))
    def _stats():
        # logits tile (Ks, TV): alphas (Ks, Rp) bf16 contracted with rho tile
        # (TV, Rp) bf16 over R (MXU absorbs the transpose).
        logit = lax.dot_general(
            alpha_ref[...], rho_ref[...],
            dimension_numbers=(((1,), (1,)), ((), ())),
            preferred_element_type=jnp.float32)
        cache_ref[v] = logit                                     # logits cache

        m_prev = m_scr[...]                                      # (Ks, 1)
        m_new = jnp.maximum(m_prev, jnp.max(logit, axis=-1, keepdims=True))
        e = jnp.exp(logit - m_new)
        # Exclude padded vocab columns from the softmax sum only (the shared
        # max is self-consistent either way).
        col = v * v_tile + lax.broadcasted_iota(jnp.int32, logit.shape, 1)
        e = jnp.where(col < vact_ref[w], e, 0.0)
        l_scr[...] = (l_scr[...] * jnp.exp(m_prev - m_new)
                      + jnp.sum(e, axis=-1, keepdims=True))
        m_scr[...] = m_new

    @pl.when(jnp.logical_and(p == 1, active))
    def _loss():
        inv_l = pl.reciprocal(l_scr[...], approx=True)           # (Ks, 1)
        beta = jnp.exp(cache_ref[v] - m_scr[...]) * inv_l        # (Ks, TV)
        res = jnp.dot(theta_ref[...], beta.astype(jnp.bfloat16),
                      preferred_element_type=jnp.float32)        # (B, TV)
        preds = jnp.log(res + 1e-6)
        # Padded cols: beta>0 -> finite log, but bows==0 there -> contributes 0.
        part = jnp.sum(preds * bows_ref[...], axis=1, keepdims=True)  # (B, 1)
        loss_scr[...] -= jnp.sum(part, axis=0, keepdims=True)         # (1, 1)

    @pl.when(jnp.logical_and(p == 1, v == n_v - 1))
    def _final():
        loss_ref[...] = jnp.broadcast_to(loss_scr[...] * (1.0 / batch),
                                         loss_ref.shape)


def decode_recon_loss(theta_s, alphas_s, rho_s, bows_s, vact, ntile, *, v_tile):
    _, V_pad, R_pad = rho_s.shape
    _, B, _ = bows_s.shape
    K_s = theta_s.shape[1]
    n_v = V_pad // v_tile

    kernel = functools.partial(_decode_kernel, v_tile=v_tile, batch=B)
    return pl.pallas_call(
        kernel,
        grid_spec=pltpu.PrefetchScalarGridSpec(
            num_scalar_prefetch=2,                  # vact (2,), ntile (2,)
            grid=(2, 2, n_v),
            in_specs=[
                # theta (B, Ks) bf16, resident.
                pl.BlockSpec((B, K_s), lambda w, q, v, va, nt: (0, 0)),
                # alphas (2, Ks, Rp) bf16, per-vocab resident.
                pl.BlockSpec((None, K_s, R_pad),
                             lambda w, q, v, va, nt: (w, 0, 0)),
                # rho tile: streamed in pass 0 only; clamped past the active
                # tiles so dead tiles trigger no DMA.
                pl.BlockSpec((None, v_tile, R_pad),
                             lambda w, q, v, va, nt:
                             (w, jnp.minimum(v, nt[w] - 1) * (1 - q), 0)),
                # bows tile: streamed in pass 1 only.
                pl.BlockSpec((None, B, v_tile),
                             lambda w, q, v, va, nt:
                             (w, 0, jnp.minimum(v, nt[w] - 1) * q)),
            ],
            # Lane-dense (8,128) output tile per vocab (value broadcast).
            out_specs=pl.BlockSpec((1, 8, LANE),
                                   lambda w, q, v, va, nt: (w, 0, 0)),
            scratch_shapes=[
                pltpu.VMEM((K_s, 1), jnp.float32),       # running max / topic
                pltpu.VMEM((K_s, 1), jnp.float32),       # running sum-exp / topic
                pltpu.VMEM((1, 1), jnp.float32),         # loss accumulator
                pltpu.VMEM((n_v, K_s, v_tile), jnp.float32),  # logits cache
            ],
        ),
        out_shape=jax.ShapeDtypeStruct((2, 8, LANE), jnp.float32),
        compiler_params=pltpu.CompilerParams(
            dimension_semantics=("parallel", "arbitrary", "arbitrary"),
            vmem_limit_bytes=VMEM_LIMIT),
    )(vact, ntile, theta_s, alphas_s, rho_s, bows_s)


# ----------------------------------------------------------------------------
# Full forward (trace-time BN folding, padding, bf16 casts in the wrapper)
# ----------------------------------------------------------------------------
@functools.partial(jax.jit, static_argnames=("vocab_size1", "vocab_size2",
                                             "predcoef"))
def etm_forward(bows, normalized_bows, params, *, vocab_size1, vocab_size2,
                predcoef):
    p = params
    B, V = bows.shape
    H = p["W1"].shape[1]
    K = p["Wmu"].shape[1]
    R = p["rho1_w"].shape[1]

    H_pad = _round_up(H, LANE)
    K_pad = _round_up(K, LANE)     # lane-dense head width (encoder only)
    K_s = _round_up(K, 8)          # sublane-dense topic dim (decode)
    R_pad = _round_up(R, LANE)

    # Eval-mode BatchNorm is affine; BN follows the ReLU, so fold it into the
    # *next* Linear's weights/bias.
    scale1 = p["g1"] * lax.rsqrt(p["v1"] + BN_EPS)      # (1, H)
    shift1 = p["be1"] - scale1 * p["m1"]
    scale2 = p["g2"] * lax.rsqrt(p["v2"] + BN_EPS)
    shift2 = p["be2"] - scale2 * p["m2"]

    W2f = scale1.T * p["W2"]
    b2f = shift1 @ p["W2"] + p["b2"]
    Wmu_f = scale2.T * p["Wmu"]
    bmu_f = shift2 @ p["Wmu"] + p["bmu"]
    Wls_f = scale2.T * p["Wls"]
    bls_f = shift2 @ p["Wls"] + p["bls"]

    # ----- encoder: lane-dense padding; bf16 matmul operands, f32 biases -----
    V_enc_pad, tv_enc = _vocab_tiling(V, ENC_MAX_TILE)
    x_p = _pad2(normalized_bows, B, V_enc_pad).astype(jnp.bfloat16)
    W1_p = _pad2(p["W1"], V_enc_pad, H_pad).astype(jnp.bfloat16)
    b1_p = _pad2(p["b1"], 1, H_pad)
    W2_p = _pad2(W2f, H_pad, H_pad).astype(jnp.bfloat16)
    b2_p = _pad2(b2f, 1, H_pad)
    Wh_p = jnp.concatenate([_pad2(Wmu_f, H_pad, K_pad),
                            _pad2(Wls_f, H_pad, K_pad)],
                           axis=1).astype(jnp.bfloat16)
    bh_p = jnp.concatenate([_pad2(bmu_f, 1, K_pad),
                            _pad2(bls_f, 1, K_pad)], axis=1)

    theta, kld = encode_and_theta(x_p, W1_p, b1_p, W2_p, b2_p, Wh_p, bh_p,
                                  num_topics=K, v_tile=tv_enc)

    # ----- fused two-vocab decode (padded topic lanes of theta are exact 0) --
    V_dec = max(vocab_size1, vocab_size2)
    V_dec_pad, tv_dec = _vocab_tiling(V_dec, DEC_MAX_TILE)

    theta_s = theta[:, :K_s].astype(jnp.bfloat16)
    rho_s = jnp.stack([_pad2(p["rho1_w"], V_dec_pad, R_pad),
                       _pad2(p["rho2_w"], V_dec_pad, R_pad)]).astype(jnp.bfloat16)
    alphas_s = jnp.stack([_pad2(p["alphas1_w"], K_s, R_pad),
                          _pad2(p["alphas2_w"], K_s, R_pad)]).astype(jnp.bfloat16)
    bows_s = jnp.stack([_pad2(bows[:, :vocab_size1], B, V_dec_pad),
                        _pad2(bows[:, -vocab_size2:], B, V_dec_pad)])
    vact = jnp.array([vocab_size1, vocab_size2], dtype=jnp.int32)
    ntile = jnp.array([pl.cdiv(vocab_size1, tv_dec),
                       pl.cdiv(vocab_size2, tv_dec)], dtype=jnp.int32)

    losses = decode_recon_loss(theta_s, alphas_s, rho_s, bows_s, vact, ntile,
                               v_tile=tv_dec)
    recon = (losses[0, 0, 0] + losses[1, 0, 0]) * predcoef
    return recon, kld[0, 0]


# ----------------------------------------------------------------------------
# Pure-JAX f32 reference (matches the PyTorch module in eval mode)
# ----------------------------------------------------------------------------
def etm_forward_ref(bows, normalized_bows, p, *, vocab_size1, vocab_size2,
                    predcoef):
    x = normalized_bows
    h = jnp.maximum(x @ p["W1"] + p["b1"], 0.0)
    h = p["g1"] * (h - p["m1"]) / jnp.sqrt(p["v1"] + BN_EPS) + p["be1"]
    h = jnp.maximum(h @ p["W2"] + p["b2"], 0.0)
    h = p["g2"] * (h - p["m2"]) / jnp.sqrt(p["v2"] + BN_EPS) + p["be2"]
    mu = h @ p["Wmu"] + p["bmu"]
    ls = h @ p["Wls"] + p["bls"]
    kld = jnp.mean(-0.5 * jnp.sum(1.0 + ls - mu**2 - jnp.exp(ls), axis=-1))
    theta = jax.nn.softmax(mu, axis=-1)

    def beta_of(rho_w, alpha_w):
        logit = rho_w @ alpha_w.T                    # (V, K)
        return jax.nn.softmax(logit, axis=0).T       # (K, V)

    beta1 = beta_of(p["rho1_w"], p["alphas1_w"])
    beta2 = beta_of(p["rho2_w"], p["alphas2_w"])
    preds1 = jnp.log(theta @ beta1 + 1e-6)
    preds2 = jnp.log(theta @ beta2 + 1e-6)
    recon = jnp.mean(-(preds1 * bows[:, :vocab_size1]).sum(1)
                     - (preds2 * bows[:, -vocab_size2:]).sum(1))
    return recon * predcoef, kld


# ----------------------------------------------------------------------------
# Deterministic parameter init + driver
# ----------------------------------------------------------------------------
def init_params(key, *, num_topics, vocab_size1, vocab_size2, t_hidden_size,
                rho_size):
    V = vocab_size1 + vocab_size2
    H = t_hidden_size
    K = num_topics
    R = rho_size
    ks = jax.random.split(key, 16)
    f32 = jnp.float32

    def nrm(k, shape, scale=0.05):
        return (scale * jax.random.normal(k, shape)).astype(f32)

    p = {
        "W1": nrm(ks[0], (V, H)), "b1": nrm(ks[1], (1, H)),
        "g1": 1.0 + nrm(ks[2], (1, H)), "be1": nrm(ks[3], (1, H)),
        "m1": nrm(ks[4], (1, H)),
        "v1": (1.0 + 0.1 * jax.random.uniform(ks[5], (1, H))).astype(f32),
        "W2": nrm(ks[6], (H, H)), "b2": nrm(ks[7], (1, H)),
        "g2": 1.0 + nrm(ks[8], (1, H)), "be2": nrm(ks[9], (1, H)),
        "m2": nrm(ks[10], (1, H)),
        "v2": (1.0 + 0.1 * jax.random.uniform(ks[11], (1, H))).astype(f32),
        "Wmu": nrm(ks[12], (H, K)), "bmu": nrm(ks[13], (1, K)),
        "Wls": nrm(ks[14], (H, K)), "bls": nrm(ks[15], (1, K)),
    }
    k2 = jax.random.split(jax.random.fold_in(key, 7), 4)
    p["rho1_w"] = nrm(k2[0], (vocab_size1, R), 0.1)
    p["rho2_w"] = nrm(k2[1], (vocab_size2, R), 0.1)
    p["alphas1_w"] = nrm(k2[2], (K, R), 0.1)
    p["alphas2_w"] = nrm(k2[3], (K, R), 0.1)
    return p


if __name__ == "__main__":
    num_topics = 8
    vocab_size1 = 64
    vocab_size2 = 48
    t_hidden_size = 32
    rho_size = 16
    predcoef = 2.0
    batch = 8
    V = vocab_size1 + vocab_size2

    key = jax.random.PRNGKey(0)
    k_par, k_bow = jax.random.split(key)
    params = init_params(k_par, num_topics=num_topics, vocab_size1=vocab_size1,
                         vocab_size2=vocab_size2, t_hidden_size=t_hidden_size,
                         rho_size=rho_size)

    bows = jnp.floor(5.0 * jax.random.uniform(k_bow, (batch, V))).astype(jnp.float32)
    normalized_bows = bows / jnp.maximum(bows.sum(axis=1, keepdims=True), 1.0)

    recon_loss, kld_theta = etm_forward(
        bows, normalized_bows, params,
        vocab_size1=vocab_size1, vocab_size2=vocab_size2, predcoef=predcoef)
    recon_loss = jax.block_until_ready(recon_loss)
    kld_theta = jax.block_until_ready(kld_theta)

    recon_ref, kld_ref = etm_forward_ref(
        bows, normalized_bows, params,
        vocab_size1=vocab_size1, vocab_size2=vocab_size2, predcoef=predcoef)

    np.testing.assert_allclose(np.asarray(recon_loss), np.asarray(recon_ref),
                               rtol=2e-2, atol=2e-2)
    np.testing.assert_allclose(np.asarray(kld_theta), np.asarray(kld_ref),
                               rtol=2e-2, atol=2e-2)
    print("KERNEL_OK")
</pallas_src>

<mosaic_0001>
module attributes {stable_mosaic.version = 11 : i64} {
  func.func @_encoder_kernel(%arg0: i32, %arg1: memref<8x128xbf16, #tpu.memory_space<vmem>>, %arg2: memref<128x128xbf16, #tpu.memory_space<vmem>>, %arg3: memref<1x128xf32, #tpu.memory_space<vmem>>, %arg4: memref<128x128xbf16, #tpu.memory_space<vmem>>, %arg5: memref<1x128xf32, #tpu.memory_space<vmem>>, %arg6: memref<128x256xbf16, #tpu.memory_space<vmem>>, %arg7: memref<1x256xf32, #tpu.memory_space<vmem>>, %arg8: memref<8x128xf32, #tpu.memory_space<vmem>>, %arg9: memref<1x1xf32, #tpu.memory_space<vmem>>, %arg10: memref<8x128xf32, #tpu.memory_space<vmem>>) attributes {dimension_semantics = [#tpu.dimension_semantics<arbitrary>], iteration_bounds = array<i64: 1>, scalar_prefetch = 0 : i64, scratch_operands = 1 : i64, tpu.core_type = #tpu.core_type<tc>, window_params = [{transform_indices = @transform_0, window_bounds = array<i64: 8, 128>}, {transform_indices = @transform_1, window_bounds = array<i64: 128, 128>}, {pipeline_mode = #tpu.pipeline_mode<synchronous>, transform_indices = @transform_2, window_bounds = array<i64: 1, 128>}, {pipeline_mode = #tpu.pipeline_mode<synchronous>, transform_indices = @transform_3, window_bounds = array<i64: 128, 128>}, {pipeline_mode = #tpu.pipeline_mode<synchronous>, transform_indices = @transform_4, window_bounds = array<i64: 1, 128>}, {pipeline_mode = #tpu.pipeline_mode<synchronous>, transform_indices = @transform_5, window_bounds = array<i64: 128, 256>}, {pipeline_mode = #tpu.pipeline_mode<synchronous>, transform_indices = @transform_6, window_bounds = array<i64: 1, 256>}, {pipeline_mode = #tpu.pipeline_mode<synchronous>, transform_indices = @transform_7, window_bounds = array<i64: 8, 128>}, {pipeline_mode = #tpu.pipeline_mode<synchronous>, transform_indices = @transform_8, window_bounds = array<i64: 1, 1>}]} {
    %c0_i32 = arith.constant 0 : i32
    %0 = arith.cmpi eq, %arg0, %c0_i32 : i32
    %1 = arith.extui %0 : i1 to i32
    %c0_i32_0 = arith.constant 0 : i32
    %2 = arith.cmpi ne, %1, %c0_i32_0 : i32
    scf.if %2 {
      %cst_10 = arith.constant 0.000000e+00 : f32
      %12 = vector.broadcast %cst_10 : f32 to vector<8x128xf32>
      %c0_11 = arith.constant 0 : index
      %c0_12 = arith.constant 0 : index
      %13 = vector.load %arg10[%c0_11, %c0_12] : memref<8x128xf32, #tpu.memory_space<vmem>>, vector<8x128xf32>
      tpu.vector_store %arg10[%c0_11, %c0_12], %12 {strides = array<i32>} : memref<8x128xf32, #tpu.memory_space<vmem>>, vector<8x128xf32>,
    } else {
    }
    %c0 = arith.constant 0 : index
    %c0_1 = arith.constant 0 : index
    %3 = vector.load %arg10[%c0, %c0_1] : memref<8x128xf32, #tpu.memory_space<vmem>>, vector<8x128xf32>
    %c0_2 = arith.constant 0 : index
    %c0_3 = arith.constant 0 : index
    %4 = vector.load %arg1[%c0_2, %c0_3] : memref<8x128xbf16, #tpu.memory_space<vmem>>, vector<8x128xbf16>
    %c0_4 = arith.constant 0 : index
    %c0_5 = arith.constant 0 : index
    %5 = vector.load %arg2[%c0_4, %c0_5] : memref<128x128xbf16, #tpu.memory_space<vmem>>, vector<128x128xbf16>
    %cst = arith.constant dense<0.000000e+00> : vector<8x128xf32>
    %6 = tpu.matmul %4, %5, %cst {dimension_numbers = #tpu.dot_dimension_numbers<[1], [0], [0], [1], [0, 0, 1, 1], [], []>} : vector<8x128xbf16>, vector<128x128xbf16>, vector<8x128xf32> -> vector<8x128xf32>
    %7 = arith.addf %3, %6 : vector<8x128xf32>
    %c0_6 = arith.constant 0 : index
    %c0_7 = arith.constant 0 : index
    %8 = vector.load %arg10[%c0_6, %c0_7] : memref<8x128xf32, #tpu.memory_space<vmem>>, vector<8x128xf32>
    tpu.vector_store %arg10[%c0_6, %c0_7], %7 {strides = array<i32>} : memref<8x128xf32, #tpu.memory_space<vmem>>, vector<8x128xf32>,
    %c0_i32_8 = arith.constant 0 : i32
    %9 = arith.cmpi eq, %arg0, %c0_i32_8 : i32
    %10 = arith.extui %9 : i1 to i32
    %c0_i32_9 = arith.constant 0 : i32
    %11 = arith.cmpi ne, %10, %c0_i32_9 : i32
    scf.if %11 {
      %c0_10 = arith.constant 0 : index
      %c0_11 = arith.constant 0 : index
      %12 = vector.load %arg10[%c0_10, %c0_11] : memref<8x128xf32, #tpu.memory_space<vmem>>, vector<8x128xf32>
      %c0_12 = arith.constant 0 : index
      %c0_13 = arith.constant 0 : index
      %13 = vector.load %arg3[%c0_12, %c0_13] : memref<1x128xf32, #tpu.memory_space<vmem>>, vector<1x128xf32>
      %14 = vector.broadcast %13 : vector<1x128xf32> to vector<8x128xf32>
      %15 = arith.addf %12, %14 : vector<8x128xf32>
      %cst_14 = arith.constant 0.000000e+00 : f32
      %16 = vector.broadcast %cst_14 : f32 to vector<8x128xf32>
      %17 = arith.maximumf %15, %16 : vector<8x128xf32>
      %18 = arith.truncf %17 : vector<8x128xf32> to vector<8x128xbf16>
      %c0_15 = arith.constant 0 : index
      %c0_16 = arith.constant 0 : index
      %19 = vector.load %arg4[%c0_15, %c0_16] : memref<128x128xbf16, #tpu.memory_space<vmem>>, vector<128x128xbf16>
      %cst_17 = arith.constant dense<0.000000e+00> : vector<8x128xf32>
      %20 = tpu.matmul %18, %19, %cst_17 {dimension_numbers = #tpu.dot_dimension_numbers<[1], [0], [0], [1], [0, 0, 1, 1], [], []>} : vector<8x128xbf16>, vector<128x128xbf16>, vector<8x128xf32> -> vector<8x128xf32>
      %c0_18 = arith.constant 0 : index
      %c0_19 = arith.constant 0 : index
      %21 = vector.load %arg5[%c0_18, %c0_19] : memref<1x128xf32, #tpu.memory_space<vmem>>, vector<1x128xf32>
      %22 = vector.broadcast %21 : vector<1x128xf32> to vector<8x128xf32>
      %23 = arith.addf %20, %22 : vector<8x128xf32>
      %cst_20 = arith.constant 0.000000e+00 : f32
      %24 = vector.broadcast %cst_20 : f32 to vector<8x128xf32>
      %25 = arith.maximumf %23, %24 : vector<8x128xf32>
      %26 = arith.truncf %25 : vector<8x128xf32> to vector<8x128xbf16>
      %c0_21 = arith.constant 0 : index
      %c0_22 = arith.constant 0 : index
      %27 = vector.load %arg6[%c0_21, %c0_22] : memref<128x256xbf16, #tpu.memory_space<vmem>>, vector<128x256xbf16>
      %cst_23 = arith.constant dense<0.000000e+00> : vector<8x256xf32>
      %28 = tpu.matmul %26, %27, %cst_23 {dimension_numbers = #tpu.dot_dimension_numbers<[1], [0], [0], [1], [0, 0, 1, 1], [], []>} : vector<8x128xbf16>, vector<128x256xbf16>, vector<8x256xf32> -> vector<8x256xf32>
      %c0_24 = arith.constant 0 : index
      %c0_25 = arith.constant 0 : index
      %29 = vector.load %arg7[%c0_24, %c0_25] : memref<1x256xf32, #tpu.memory_space<vmem>>, vector<1x256xf32>
      %30 = vector.broadcast %29 : vector<1x256xf32> to vector<8x256xf32>
      %31 = arith.addf %28, %30 : vector<8x256xf32>
      %32 = vector.extract_strided_slice %31 {offsets = [0, 0], sizes = [8, 128], strides = [1, 1]} : vector<8x256xf32> to vector<8x128xf32>
      %33 = vector.extract_strided_slice %31 {offsets = [0, 128], sizes = [8, 128], strides = [1, 1]} : vector<8x256xf32> to vector<8x128xf32>
      %cst_26 = arith.constant 1.000000e+00 : f32
      %34 = vector.broadcast %cst_26 : f32 to vector<8x128xf32>
      %35 = arith.addf %34, %33 : vector<8x128xf32>
      %36 = arith.mulf %32, %32 : vector<8x128xf32>
      %37 = arith.subf %35, %36 : vector<8x128xf32>
      %38 = math.exp %33 : vector<8x128xf32>
      %39 = arith.subf %37, %38 : vector<8x128xf32>
      %cst_27 = arith.constant dense<0.000000e+00> : vector<8xf32>
      %40 = vector.multi_reduction <add>, %39, %cst_27 [1] : vector<8x128xf32> to vector<8xf32>
      %41 = vector.shape_cast %40 : vector<8xf32> to vector<8x1xf32>
      %cst_28 = arith.constant -5.000000e-01 : f32
      %42 = vector.broadcast %cst_28 : f32 to vector<8x1xf32>
      %43 = arith.mulf %42, %41 : vector<8x1xf32>
      %cst_29 = arith.constant dense<0.000000e+00> : vector<1xf32>
      %44 = vector.multi_reduction <add>, %43, %cst_29 [0] : vector<8x1xf32> to vector<1xf32>
      %45 = vector.shape_cast %44 : vector<1xf32> to vector<1x1xf32>
      %cst_30 = arith.constant 8.000000e+00 : f32
      %46 = vector.broadcast %cst_30 : f32 to vector<1x1xf32>
      %47 = arith.divf %45, %46 : vector<1x1xf32>
      %c0_31 = arith.constant 0 : index
      %c0_32 = arith.constant 0 : index
      %48 = vector.load %arg9[%c0_31, %c0_32] : memref<1x1xf32, #tpu.memory_space<vmem>>, vector<1x1xf32>
      tpu.vector_store %arg9[%c0_31, %c0_32], %47 {strides = array<i32>} : memref<1x1xf32, #tpu.memory_space<vmem>>, vector<1x1xf32>,
      %49 = tpu.iota {dimensions = array<i32: 1>} : vector<8x128xi32>
      %c8_i32 = arith.constant 8 : i32
      %50 = vector.broadcast %c8_i32 : i32 to vector<8x128xi32>
      %51 = arith.cmpi slt, %49, %50 : vector<8x128xi32>
      %cst_33 = arith.constant -1.000000e+30 : f32
      %52 = vector.broadcast %cst_33 : f32 to vector<8x128xf32>
      %53 = arith.select %51, %32, %52 : vector<8x128xi1>, vector<8x128xf32>
      %cst_34 = arith.constant dense<0xFF800000> : vector<8xf32>
      %54 = vector.multi_reduction <maximumf>, %53, %cst_34 [1] : vector<8x128xf32> to vector<8xf32>
      %55 = vector.shape_cast %54 : vector<8xf32> to vector<8x1xf32>
      %56 = vector.broadcast %55 : vector<8x1xf32> to vector<8x128xf32>
      %57 = arith.subf %53, %56 : vector<8x128xf32>
      %58 = math.exp %57 : vector<8x128xf32>
      %cst_35 = arith.constant dense<0.000000e+00> : vector<8xf32>
      %59 = vector.multi_reduction <add>, %58, %cst_35 [1] : vector<8x128xf32> to vector<8xf32>
      %60 = vector.shape_cast %59 : vector<8xf32> to vector<8x1xf32>
      %61 = vector.broadcast %60 : vector<8x1xf32> to vector<8x128xf32>
      %62 = arith.divf %58, %61 : vector<8x128xf32>
      %c0_36 = arith.constant 0 : index
      %c0_37 = arith.constant 0 : index
      %63 = vector.load %arg8[%c0_36, %c0_37] : memref<8x128xf32, #tpu.memory_space<vmem>>, vector<8x128xf32>
      tpu.vector_store %arg8[%c0_36, %c0_37], %62 {strides = array<i32>} : memref<8x128xf32, #tpu.memory_space<vmem>>, vector<8x128xf32>,
    } else {
    }
    return
  }
  func.func @transform_0(%arg0: i32) -> (i32, i32) {
    %c0_i32 = arith.constant 0 : i32
    %c0_i32_0 = arith.constant 0 : i32
    return %c0_i32, %arg0 : i32, i32
  }
  func.func @transform_1(%arg0: i32) -> (i32, i32) {
    %c0_i32 = arith.constant 0 : i32
    %c0_i32_0 = arith.constant 0 : i32
    return %arg0, %c0_i32 : i32, i32
  }
  func.func @transform_2(%arg0: i32) -> (i32, i32) {
    %c0_i32 = arith.constant 0 : i32
    %c0_i32_0 = arith.constant 0 : i32
    %c0_i32_1 = arith.constant 0 : i32
    return %c0_i32, %c0_i32_0 : i32, i32
  }
  func.func @transform_3(%arg0: i32) -> (i32, i32) {
    %c0_i32 = arith.constant 0 : i32
    %c0_i32_0 = arith.constant 0 : i32
    %c0_i32_1 = arith.constant 0 : i32
    return %c0_i32, %c0_i32_0 : i32, i32
  }
  func.func @transform_4(%arg0: i32) -> (i32, i32) {
    %c0_i32 = arith.constant 0 : i32
    %c0_i32_0 = arith.constant 0 : i32
    %c0_i32_1 = arith.constant 0 : i32
    return %c0_i32, %c0_i32_0 : i32, i32
  }
  func.func @transform_5(%arg0: i32) -> (i32, i32) {
    %c0_i32 = arith.constant 0 : i32
    %c0_i32_0 = arith.constant 0 : i32
    %c0_i32_1 = arith.constant 0 : i32
    return %c0_i32, %c0_i32_0 : i32, i32
  }
  func.func @transform_6(%arg0: i32) -> (i32, i32) {
    %c0_i32 = arith.constant 0 : i32
    %c0_i32_0 = arith.constant 0 : i32
    %c0_i32_1 = arith.constant 0 : i32
    return %c0_i32, %c0_i32_0 : i32, i32
  }
  func.func @transform_7(%arg0: i32) -> (i32, i32) {
    %c0_i32 = arith.constant 0 : i32
    %c0_i32_0 = arith.constant 0 : i32
    %c0_i32_1 = arith.constant 0 : i32
    return %c0_i32, %c0_i32_0 : i32, i32
  }
  func.func @transform_8(%arg0: i32) -> (i32, i32) {
    %c0_i32 = arith.constant 0 : i32
    %c0_i32_0 = arith.constant 0 : i32
    %c0_i32_1 = arith.constant 0 : i32
    return %c0_i32, %c0_i32_0 : i32, i32
  }
}

module attributes {stable_mosaic.version = 11 : i64} {
  func.func @_decode_kernel(%arg0: i32, %arg1: i32, %arg2: i32, %arg3: memref<2xi32, #tpu.memory_space<smem>>, %arg4: memref<2xi32, #tpu.memory_space<smem>>, %arg5: memref<8x8xbf16, #tpu.memory_space<vmem>>, %arg6: memref<1x8x128xbf16, #tpu.memory_space<vmem>>, %arg7: memref<1x128x128xbf16, #tpu.memory_space<vmem>>, %arg8: memref<1x8x128xf32, #tpu.memory_space<vmem>>, %arg9: memref<1x8x128xf32, #tpu.memory_space<vmem>>, %arg10: memref<8x1xf32, #tpu.memory_space<vmem>>, %arg11: memref<8x1xf32, #tpu.memory_space<vmem>>, %arg12: memref<1x1xf32, #tpu.memory_space<vmem>>, %arg13: memref<1x8x128xf32, #tpu.memory_space<vmem>>) attributes {dimension_semantics = [#tpu.dimension_semantics<parallel>, #tpu.dimension_semantics<arbitrary>, #tpu.dimension_semantics<arbitrary>], iteration_bounds = array<i64: 2, 2, 1>, scalar_prefetch = 2 : i64, scratch_operands = 4 : i64, tpu.core_type = #tpu.core_type<tc>, window_params = [{pipeline_mode = #tpu.pipeline_mode<synchronous>, transform_indices = @transform_0, window_bounds = array<i64: 8, 8>}, {transform_indices = @transform_1, window_bounds = array<i64: 1, 8, 128>}, {transform_indices = @transform_2, window_bounds = array<i64: 1, 128, 128>}, {transform_indices = @transform_3, window_bounds = array<i64: 1, 8, 128>}, {transform_indices = @transform_4, window_bounds = array<i64: 1, 8, 128>}]} {
    %0 = arith.index_cast %arg0 : i32 to index
    %1 = memref.load %arg4[%0] : memref<2xi32, #tpu.memory_space<smem>>
    %2 = arith.cmpi slt, %arg2, %1 : i32
    %c0_i32 = arith.constant 0 : i32
    %3 = arith.cmpi eq, %arg1, %c0_i32 : i32
    %c0_i32_0 = arith.constant 0 : i32
    %4 = arith.cmpi eq, %arg2, %c0_i32_0 : i32
    %5 = arith.andi %3, %4 : i1
    %6 = arith.extui %5 : i1 to i32
    %c0_i32_1 = arith.constant 0 : i32
    %7 = arith.cmpi ne, %6, %c0_i32_1 : i32
    scf.if %7 {
      %cst = arith.constant -1.000000e+30 : f32
      %21 = vector.broadcast %cst : f32 to vector<8x1xf32>
      %c0 = arith.constant 0 : index
      %c0_8 = arith.constant 0 : index
      %22 = vector.load %arg10[%c0, %c0_8] : memref<8x1xf32, #tpu.memory_space<vmem>>, vector<8x1xf32>
      tpu.vector_store %arg10[%c0, %c0_8], %21 {strides = array<i32>} : memref<8x1xf32, #tpu.memory_space<vmem>>, vector<8x1xf32>,
      %cst_9 = arith.constant 0.000000e+00 : f32
      %23 = vector.broadcast %cst_9 : f32 to vector<8x1xf32>
      %c0_10 = arith.constant 0 : index
      %c0_11 = arith.constant 0 : index
      %24 = vector.load %arg11[%c0_10, %c0_11] : memref<8x1xf32, #tpu.memory_space<vmem>>, vector<8x1xf32>
      tpu.vector_store %arg11[%c0_10, %c0_11], %23 {strides = array<i32>} : memref<8x1xf32, #tpu.memory_space<vmem>>, vector<8x1xf32>,
      %cst_12 = arith.constant 0.000000e+00 : f32
      %25 = vector.broadcast %cst_12 : f32 to vector<1x1xf32>
      %c0_13 = arith.constant 0 : index
      %c0_14 = arith.constant 0 : index
      %26 = vector.load %arg12[%c0_13, %c0_14] : memref<1x1xf32, #tpu.memory_space<vmem>>, vector<1x1xf32>
      tpu.vector_store %arg12[%c0_13, %c0_14], %25 {strides = array<i32>} : memref<1x1xf32, #tpu.memory_space<vmem>>, vector<1x1xf32>,
    } else {
    }
    %c0_i32_2 = arith.constant 0 : i32
    %8 = arith.cmpi eq, %arg1, %c0_i32_2 : i32
    %9 = arith.andi %8, %2 : i1
    %10 = arith.extui %9 : i1 to i32
    %c0_i32_3 = arith.constant 0 : i32
    %11 = arith.cmpi ne, %10, %c0_i32_3 : i32
    scf.if %11 {
      %c0 = arith.constant 0 : index
      %c0_8 = arith.constant 0 : index
      %c0_9 = arith.constant 0 : index
      %21 = vector.load %arg6[%c0, %c0_8, %c0_9] : memref<1x8x128xbf16, #tpu.memory_space<vmem>>, vector<1x8x128xbf16>
      %22 = vector.shape_cast %21 : vector<1x8x128xbf16> to vector<8x128xbf16>
      %c0_10 = arith.constant 0 : index
      %c0_11 = arith.constant 0 : index
      %c0_12 = arith.constant 0 : index
      %23 = vector.load %arg7[%c0_10, %c0_11, %c0_12] : memref<1x128x128xbf16, #tpu.memory_space<vmem>>, vector<1x128x128xbf16>
      %24 = vector.shape_cast %23 : vector<1x128x128xbf16> to vector<128x128xbf16>
      %cst = arith.constant dense<0.000000e+00> : vector<8x128xf32>
      %25 = tpu.matmul %22, %24, %cst {dimension_numbers = #tpu.dot_dimension_numbers<[1], [1], [0], [0], [0, 0, 1, 0], [], []>} : vector<8x128xbf16>, vector<128x128xbf16>, vector<8x128xf32> -> vector<8x128xf32>
      %26 = arith.index_cast %arg2 : i32 to index
      %c0_13 = arith.constant 0 : index
      %c0_14 = arith.constant 0 : index
      %27 = vector.load %arg13[%26, %c0_13, %c0_14] : memref<1x8x128xf32, #tpu.memory_space<vmem>>, vector<1x8x128xf32>
      %28 = vector.shape_cast %27 : vector<1x8x128xf32> to vector<8x128xf32>
      %29 = vector.shape_cast %25 : vector<8x128xf32> to vector<1x8x128xf32>
      tpu.vector_store %arg13[%26, %c0_13, %c0_14], %29 {strides = array<i32>} : memref<1x8x128xf32, #tpu.memory_space<vmem>>, vector<1x8x128xf32>,
      %c0_15 = arith.constant 0 : index
      %c0_16 = arith.constant 0 : index
      %30 = vector.load %arg10[%c0_15, %c0_16] : memref<8x1xf32, #tpu.memory_space<vmem>>, vector<8x1xf32>
      %cst_17 = arith.constant dense<0xFF800000> : vector<8xf32>
      %31 = vector.multi_reduction <maximumf>, %25, %cst_17 [1] : vector<8x128xf32> to vector<8xf32>
      %32 = vector.shape_cast %31 : vector<8xf32> to vector<8x1xf32>
      %33 = arith.maximumf %30, %32 : vector<8x1xf32>
      %34 = vector.broadcast %33 : vector<8x1xf32> to vector<8x128xf32>
      %35 = arith.subf %25, %34 : vector<8x128xf32>
      %36 = math.exp %35 : vector<8x128xf32>
      %c128_i32 = arith.constant 128 : i32
      %37 = arith.muli %arg2, %c128_i32 : i32
      %38 = tpu.iota {dimensions = array<i32: 1>} : vector<8x128xi32>
      %39 = vector.broadcast %37 : i32 to vector<8x128xi32>
      %40 = arith.addi %39, %38 : vector<8x128xi32>
      %41 = arith.index_cast %arg0 : i32 to index
      %42 = memref.load %arg3[%41] : memref<2xi32, #tpu.memory_space<smem>>
      %43 = vector.broadcast %42 : i32 to vector<8x128xi32>
      %44 = arith.cmpi slt, %40, %43 : vector<8x128xi32>
      %cst_18 = arith.constant 0.000000e+00 : f32
      %45 = vector.broadcast %cst_18 : f32 to vector<8x128xf32>
      %46 = arith.select %44, %36, %45 : vector<8x128xi1>, vector<8x128xf32>
      %c0_19 = arith.constant 0 : index
      %c0_20 = arith.constant 0 : index
      %47 = vector.load %arg11[%c0_19, %c0_20] : memref<8x1xf32, #tpu.memory_space<vmem>>, vector<8x1xf32>
      %48 = arith.subf %30, %33 : vector<8x1xf32>
      %49 = math.exp %48 : vector<8x1xf32>
      %50 = arith.mulf %47, %49 : vector<8x1xf32>
      %cst_21 = arith.constant dense<0.000000e+00> : vector<8xf32>
      %51 = vector.multi_reduction <add>, %46, %cst_21 [1] : vector<8x128xf32> to vector<8xf32>
      %52 = vector.shape_cast %51 : vector<8xf32> to vector<8x1xf32>
      %53 = arith.addf %50, %52 : vector<8x1xf32>
      %c0_22 = arith.constant 0 : index
      %c0_23 = arith.constant 0 : index
      %54 = vector.load %arg11[%c0_22, %c0_23] : memref<8x1xf32, #tpu.memory_space<vmem>>, vector<8x1xf32>
      tpu.vector_store %arg11[%c0_22, %c0_23], %53 {strides = array<i32>} : memref<8x1xf32, #tpu.memory_space<vmem>>, vector<8x1xf32>,
      %c0_24 = arith.constant 0 : index
      %c0_25 = arith.constant 0 : index
      %55 = vector.load %arg10[%c0_24, %c0_25] : memref<8x1xf32, #tpu.memory_space<vmem>>, vector<8x1xf32>
      tpu.vector_store %arg10[%c0_24, %c0_25], %33 {strides = array<i32>} : memref<8x1xf32, #tpu.memory_space<vmem>>, vector<8x1xf32>,
    } else {
    }
    %c1_i32 = arith.constant 1 : i32
    %12 = arith.cmpi eq, %arg1, %c1_i32 : i32
    %13 = arith.andi %12, %2 : i1
    %14 = arith.extui %13 : i1 to i32
    %c0_i32_4 = arith.constant 0 : i32
    %15 = arith.cmpi ne, %14, %c0_i32_4 : i32
    scf.if %15 {
      %c0 = arith.constant 0 : index
      %c0_8 = arith.constant 0 : index
      %21 = vector.load %arg11[%c0, %c0_8] : memref<8x1xf32, #tpu.memory_space<vmem>>, vector<8x1xf32>
      %22 = tpu.reciprocal %21 {approx = true} : vector<8x1xf32> -> vector<8x1xf32>
      %23 = arith.index_cast %arg2 : i32 to index
      %c0_9 = arith.constant 0 : index
      %c0_10 = arith.constant 0 : index
      %24 = vector.load %arg13[%23, %c0_9, %c0_10] : memref<1x8x128xf32, #tpu.memory_space<vmem>>, vector<1x8x128xf32>
      %25 = vector.shape_cast %24 : vector<1x8x128xf32> to vector<8x128xf32>
      %c0_11 = arith.constant 0 : index
      %c0_12 = arith.constant 0 : index
      %26 = vector.load %arg10[%c0_11, %c0_12] : memref<8x1xf32, #tpu.memory_space<vmem>>, vector<8x1xf32>
      %27 = vector.broadcast %26 : vector<8x1xf32> to vector<8x128xf32>
      %28 = arith.subf %25, %27 : vector<8x128xf32>
      %29 = math.exp %28 : vector<8x128xf32>
      %30 = vector.broadcast %22 : vector<8x1xf32> to vector<8x128xf32>
      %31 = arith.mulf %29, %30 : vector<8x128xf32>
      %c0_13 = arith.constant 0 : index
      %c0_14 = arith.constant 0 : index
      %32 = vector.load %arg5[%c0_13, %c0_14] : memref<8x8xbf16, #tpu.memory_space<vmem>>, vector<8x8xbf16>
      %33 = arith.truncf %31 : vector<8x128xf32> to vector<8x128xbf16>
      %cst = arith.constant dense<0.000000e+00> : vector<8x128xf32>
      %34 = tpu.matmul %32, %33, %cst {dimension_numbers = #tpu.dot_dimension_numbers<[1], [0], [0], [1], [0, 0, 1, 1], [], []>} : vector<8x8xbf16>, vector<8x128xbf16>, vector<8x128xf32> -> vector<8x128xf32>
      %cst_15 = arith.constant 9.99999997E-7 : f32
      %35 = vector.broadcast %cst_15 : f32 to vector<8x128xf32>
      %36 = arith.addf %34, %35 : vector<8x128xf32>
      %37 = math.log %36 : vector<8x128xf32>
      %c0_16 = arith.constant 0 : index
      %c0_17 = arith.constant 0 : index
      %c0_18 = arith.constant 0 : index
      %38 = vector.load %arg8[%c0_16, %c0_17, %c0_18] : memref<1x8x128xf32, #tpu.memory_space<vmem>>, vector<1x8x128xf32>
      %39 = vector.shape_cast %38 : vector<1x8x128xf32> to vector<8x128xf32>
      %40 = arith.mulf %37, %39 : vector<8x128xf32>
      %cst_19 = arith.constant dense<0.000000e+00> : vector<8xf32>
      %41 = vector.multi_reduction <add>, %40, %cst_19 [1] : vector<8x128xf32> to vector<8xf32>
      %42 = vector.shape_cast %41 : vector<8xf32> to vector<8x1xf32>
      %c0_20 = arith.constant 0 : index
      %c0_21 = arith.constant 0 : index
      %43 = vector.load %arg12[%c0_20, %c0_21] : memref<1x1xf32, #tpu.memory_space<vmem>>, vector<1x1xf32>
      %cst_22 = arith.constant dense<0.000000e+00> : vector<1xf32>
      %44 = vector.multi_reduction <add>, %42, %cst_22 [0] : vector<8x1xf32> to vector<1xf32>
      %45 = vector.shape_cast %44 : vector<1xf32> to vector<1x1xf32>
      %46 = arith.subf %43, %45 : vector<1x1xf32>
      %c0_23 = arith.constant 0 : index
      %c0_24 = arith.constant 0 : index
      %47 = vector.load %arg12[%c0_23, %c0_24] : memref<1x1xf32, #tpu.memory_space<vmem>>, vector<1x1xf32>
      tpu.vector_store %arg12[%c0_23, %c0_24], %46 {strides = array<i32>} : memref<1x1xf32, #tpu.memory_space<vmem>>, vector<1x1xf32>,
    } else {
    }
    %c1_i32_5 = arith.constant 1 : i32
    %16 = arith.cmpi eq, %arg1, %c1_i32_5 : i32
    %c0_i32_6 = arith.constant 0 : i32
    %17 = arith.cmpi eq, %arg2, %c0_i32_6 : i32
    %18 = arith.andi %16, %17 : i1
    %19 = arith.extui %18 : i1 to i32
    %c0_i32_7 = arith.constant 0 : i32
    %20 = arith.cmpi ne, %19, %c0_i32_7 : i32
    scf.if %20 {
      %c0 = arith.constant 0 : index
      %c0_8 = arith.constant 0 : index
      %21 = vector.load %arg12[%c0, %c0_8] : memref<1x1xf32, #tpu.memory_space<vmem>>, vector<1x1xf32>
      %cst = arith.constant 1.250000e-01 : f32
      %22 = vector.broadcast %cst : f32 to vector<1x1xf32>
      %23 = arith.mulf %21, %22 : vector<1x1xf32>
      %24 = vector.shape_cast %23 : vector<1x1xf32> to vector<1x1x1xf32>
      %25 = vector.broadcast %24 : vector<1x1x1xf32> to vector<1x8x128xf32>
      %c0_9 = arith.constant 0 : index
      %c0_10 = arith.constant 0 : index
      %c0_11 = arith.constant 0 : index
      %26 = vector.load %arg9[%c0_9, %c0_10, %c0_11] : memref<1x8x128xf32, #tpu.memory_space<vmem>>, vector<1x8x128xf32>
      tpu.vector_store %arg9[%c0_9, %c0_10, %c0_11], %25 {strides = array<i32>} : memref<1x8x128xf32, #tpu.memory_space<vmem>>, vector<1x8x128xf32>,
    } else {
    }
    return
  }
  func.func @transform_0(%arg0: i32, %arg1: i32, %arg2: i32, %arg3: memref<2xi32, #tpu.memory_space<smem>>, %arg4: memref<2xi32, #tpu.memory_space<smem>>) -> (i32, i32) {
    %c0_i32 = arith.constant 0 : i32
    %c0_i32_0 = arith.constant 0 : i32
    %c0_i32_1 = arith.constant 0 : i32
    return %c0_i32, %c0_i32_0 : i32, i32
  }
  func.func @transform_1(%arg0: i32, %arg1: i32, %arg2: i32, %arg3: memref<2xi32, #tpu.memory_space<smem>>, %arg4: memref<2xi32, #tpu.memory_space<smem>>) -> (i32, i32, i32) {
    %c0_i32 = arith.constant 0 : i32
    %c0_i32_0 = arith.constant 0 : i32
    %c0_i32_1 = arith.constant 0 : i32
    return %arg0, %c0_i32, %c0_i32_0 : i32, i32, i32
  }
  func.func @transform_2(%arg0: i32, %arg1: i32, %arg2: i32, %arg3: memref<2xi32, #tpu.memory_space<smem>>, %arg4: memref<2xi32, #tpu.memory_space<smem>>) -> (i32, i32, i32) {
    %0 = arith.index_cast %arg0 : i32 to index
    %1 = memref.load %arg4[%0] : memref<2xi32, #tpu.memory_space<smem>>
    %c1_i32 = arith.constant 1 : i32
    %2 = arith.subi %1, %c1_i32 : i32
    %3 = arith.minsi %arg2, %2 : i32
    %c1_i32_0 = arith.constant 1 : i32
    %4 = arith.subi %c1_i32_0, %arg1 : i32
    %5 = arith.muli %3, %4 : i32
    %c0_i32 = arith.constant 0 : i32
    %c0_i32_1 = arith.constant 0 : i32
    return %arg0, %5, %c0_i32 : i32, i32, i32
  }
  func.func @transform_3(%arg0: i32, %arg1: i32, %arg2: i32, %arg3: memref<2xi32, #tpu.memory_space<smem>>, %arg4: memref<2xi32, #tpu.memory_space<smem>>) -> (i32, i32, i32) {
    %0 = arith.index_cast %arg0 : i32 to index
    %1 = memref.load %arg4[%0] : memref<2xi32, #tpu.memory_space<smem>>
    %c1_i32 = arith.constant 1 : i32
    %2 = arith.subi %1, %c1_i32 : i32
    %3 = arith.minsi %arg2, %2 : i32
    %4 = arith.muli %3, %arg1 : i32
    %c0_i32 = arith.constant 0 : i32
    %c0_i32_0 = arith.constant 0 : i32
    return %arg0, %c0_i32, %4 : i32, i32, i32
  }
  func.func @transform_4(%arg0: i32, %arg1: i32, %arg2: i32, %arg3: memref<2xi32, #tpu.memory_space<smem>>, %arg4: memref<2xi32, #tpu.memory_space<smem>>) -> (i32, i32, i32) {
    %c0_i32 = arith.constant 0 : i32
    %c0_i32_0 = arith.constant 0 : i32
    %c0_i32_1 = arith.constant 0 : i32
    return %arg0, %c0_i32, %c0_i32_0 : i32, i32, i32
  }
}

</mosaic_0001>

<llo_original>
// kernel: etm_forward.2
$region0: #{etm_forward.2}
  #allocation0 [shape = 'u32[]', space=smem, size = 0x4, offset = 0x4, fixed_abs, tag = 'smem constant byte address 0x4 - core index']
  #allocation1 [shape = 'u32[72,128]{1,0:T(1,128)}', space=vmem, size = 0x9000, scoped, tag = 'internal scratch']
  #allocation2 [shape = 'f32[8,128]{1,0:T(8,128)}', space=vmem, size = 0x1000, scoped, tag = 'scratch operand']
  %s0 = inlined_call_operand.vmem [shape: bf16[8,128], index: 0, kind: input, shape index: {}]
  %s1 = inlined_call_operand.vmem [shape: bf16[128,128], index: 1, kind: input, shape index: {}]
  %s2 = inlined_call_operand.vmem [shape: f32[1,128], index: 2, kind: input, shape index: {}]
  %s3 = inlined_call_operand.vmem [shape: bf16[128,128], index: 3, kind: input, shape index: {}]
  %s4 = inlined_call_operand.vmem [shape: f32[1,128], index: 4, kind: input, shape index: {}]
  %s5 = inlined_call_operand.vmem [shape: bf16[128,256], index: 5, kind: input, shape index: {}]
  %s6 = inlined_call_operand.vmem [shape: f32[1,256], index: 6, kind: input, shape index: {}]
  %s7 = inlined_call_operand.vmem [shape: f32[8,128], index: 7, kind: output, shape index: {0}]
  %s8 = inlined_call_operand.hbm [shape: f32[1,1], index: 8, kind: output, shape index: {1}]
  %9 = xla_tuple %s7, %s8
  %s10 = sld [smem:[#allocation0]]
  $region54: #{etm_forward.2} parent=0
    _
  %s12 = ssub.s32 1, %s10
  %s13 = scalar_select 0, %s12, %s10
  $region1: #{etm_forward.2} parent=0
    #allocation3 [shape = 'u8[512]{0}', space=vmem, size = 0x400, scoped, tag = 'output window, operand 1, single buffered']
    #allocation4 [shape = 's32[1]{0}', space=sflag, size = 0x4, scoped, tag = 'scoped memory for etm_forward.2']
    %14 = vsyncpa [#allocation4], 0
    // Predicated region
    $region2: #{etm_forward.2} parent=1 // pred_check
      _
    $region3: #{etm_forward.2} parent=1 // pred_check_branch
      %16 = sbr.rel (0) target = $region5
    $region4: #{etm_forward.2} parent=1 // pred_region
      _
    $region5: #{etm_forward.2} parent=1 // pred_fallthru
      _
    // Predicated region
    $region6: #{etm_forward.2} parent=1 // pred_check
      _
    $region7: #{etm_forward.2} parent=1 // pred_check_branch
      %18 = sbr.rel (0) target = $region9
    $region8: #{etm_forward.2} parent=1 // pred_region
      _
    $region9: #{etm_forward.2} parent=1 // pred_fallthru
      _
    // Predicated region
    $region10: #{etm_forward.2} parent=1 // pred_check
      _
    $region11: #{etm_forward.2} parent=1 // pred_check_branch
      %20 = sbr.rel (0) target = $region13
    $region12: #{etm_forward.2} parent=1 // pred_region
      _
    $region13: #{etm_forward.2} parent=1 // pred_fallthru
      _
    // Predicated region
    $region14: #{etm_forward.2} parent=1 // pred_check
      _
    $region15: #{etm_forward.2} parent=1 // pred_check_branch
      %22 = sbr.rel (0) target = $region17
    $region16: #{etm_forward.2} parent=1 // pred_region
      _
    $region17: #{etm_forward.2} parent=1 // pred_fallthru
      _
    // Predicated region
    $region18: #{etm_forward.2} parent=1 // pred_check
      _
    $region19: #{etm_forward.2} parent=1 // pred_check_branch
      %24 = sbr.rel (0) target = $region21
    $region20: #{etm_forward.2} parent=1 // pred_region
      _
    $region21: #{etm_forward.2} parent=1 // pred_fallthru
      _
    // Predicated region
    $region22: #{etm_forward.2} parent=1 // pred_check
      _
    $region23: #{etm_forward.2} parent=1 // pred_check_branch
      %26 = sbr.rel (0) target = $region25
    $region24: #{etm_forward.2} parent=1 // pred_region
      _
    $region25: #{etm_forward.2} parent=1 // pred_fallthru
      _
    // Predicated region
    $region26: #{etm_forward.2} parent=1 // pred_check
      _
    $region27: #{etm_forward.2} parent=1 // pred_check_branch
      %28 = sbr.rel (0) target = $region29
    $region28: #{etm_forward.2} parent=1 // pred_region
      _
    $region29: #{etm_forward.2} parent=1 // pred_fallthru
      _
    %p29 = scmp.eq.s32.totalorder 0, 0
    // Predicated region
    $region30: #{etm_forward.2} parent=1 // pred_check
      %p30 = pneg %p29
    $region31: #{etm_forward.2} parent=1 // pred_check_branch
      %32 = sbr.rel (%p30) target = $region33
    $region32: #{etm_forward.2} parent=1 // pred_region
      %33 = vst [vmem:[#allocation2] sm:$0xff] 0.0
    $region33: #{etm_forward.2} parent=1 // pred_fallthru
      _
    %v34 = vld [vmem:[#allocation2] sm:$0xff]
    %v35 = vld [vmem:[%s0] sm:$0xf]
    %v36 = vld [vmem:[%s1] sm:$0xf]
    %v37 = vld [vmem:[%s1 + $0x4] sm:$0xf]
    %v38 = vld [vmem:[%s1 + $0x8] sm:$0xf]
    %v39 = vld [vmem:[%s1 + $0xc] sm:$0xf]
    %v40 = vld [vmem:[%s1 + $0x10] sm:$0xf]
    %v41 = vld [vmem:[%s1 + $0x14] sm:$0xf]
    %v42 = vld [vmem:[%s1 + $0x18] sm:$0xf]
    %v43 = vld [vmem:[%s1 + $0x1c] sm:$0xf]
    %v44 = vld [vmem:[%s1 + $0x20] sm:$0xf]
    %v45 = vld [vmem:[%s1 + $0x24] sm:$0xf]
    %v46 = vld [vmem:[%s1 + $0x28] sm:$0xf]
    %v47 = vld [vmem:[%s1 + $0x2c] sm:$0xf]
    %v48 = vld [vmem:[%s1 + $0x30] sm:$0xf]
    %v49 = vld [vmem:[%s1 + $0x34] sm:$0xf]
    %v50 = vld [vmem:[%s1 + $0x38] sm:$0xf]
    %v51 = vld [vmem:[%s1 + $0x3c] sm:$0xf]
    %v68 = vunpack.c.l.b16 %v36
    %v69 = vunpack.c.l.b16 %v37
    %v70 = vunpack.c.l.b16 %v38
    %v71 = vunpack.c.l.b16 %v39
    %v72 = vunpack.c.l.b16 %v40
    %v73 = vunpack.c.l.b16 %v41
    %v74 = vunpack.c.l.b16 %v42
    %v75 = vunpack.c.l.b16 %v43
    %v76 = vunpack.c.l.b16 %v44
    %v77 = vunpack.c.l.b16 %v45
    %v78 = vunpack.c.l.b16 %v46
    %v79 = vunpack.c.l.b16 %v47
    %v80 = vunpack.c.l.b16 %v48
    %v81 = vunpack.c.l.b16 %v49
    %v82 = vunpack.c.l.b16 %v50
    %v83 = vunpack.c.l.b16 %v51
    %v84 = vpack.c.b16 %v69, %v68
    %v85 = vpack.c.b16 %v71, %v70
    %v86 = vpack.c.b16 %v73, %v72
    %v87 = vpack.c.b16 %v75, %v74
    %v88 = vpack.c.b16 %v77, %v76
    %v89 = vpack.c.b16 %v79, %v78
    %v90 = vpack.c.b16 %v81, %v80
    %v91 = vpack.c.b16 %v83, %v82
    %100 = vmatpush.bf16.msra.mxu0 %v91
    %101 = vmatpush.bf16.msra.mxu0 %v90
    %102 = vmatpush.bf16.msra.mxu0 %v89
    %103 = vmatpush.bf16.msra.mxu0 %v88
    %104 = vmatpush.bf16.msra.mxu0 %v87
    %105 = vmatpush.bf16.msra.mxu0 %v86
    %106 = vmatpush.bf16.msra.mxu0 %v85
    %107 = vmatpush.bf16.msra.mxu0 %v84
    %108 = vmatmul.bf16.gmra.mxu0 %v35
    %v109 = vpop.f32.mrf.mxu0
    %v110 = vadd.f32 0.0, %v109
    %v111 = vpop.f32.mrf.mxu0
    %112 = vdwg.mxu0
    %v113 = vadd.f32 %v34, %v110
    %114 = vst [vmem:[#allocation2] sm:$0xff] %v113
    // Predicated region
    $region34: #{etm_forward.2} parent=1 // pred_check
      %p115 = pneg %p29
    $region35: #{etm_forward.2} parent=1 // pred_check_branch
      %117 = sbr.rel (%p115) target = $region37
    $region36: #{etm_forward.2} parent=1 // pred_region
      %v118 = vld [vmem:[#allocation2] sm:$0xff]
      %v119 = vld [vmem:[%s2] sm:$0x1]
      %v121 = vperm.slane %v119, 0
      %v123 = vadd.f32 %v118, %v121
      %v124 = vmax.f32 %v123, 0.0
      %v125 = vpack.c.bf16 %v124, %v124
      %v126 = vld [vmem:[%s3] sm:$0xf]
      %v127 = vld [vmem:[%s3 + $0x4] sm:$0xf]
      %v128 = vld [vmem:[%s3 + $0x8] sm:$0xf]
      %v129 = vld [vmem:[%s3 + $0xc] sm:$0xf]
      %v130 = vld [vmem:[%s3 + $0x10] sm:$0xf]
      %v131 = vld [vmem:[%s3 + $0x14] sm:$0xf]
      %v132 = vld [vmem:[%s3 + $0x18] sm:$0xf]
      %v133 = vld [vmem:[%s3 + $0x1c] sm:$0xf]
      %v134 = vld [vmem:[%s3 + $0x20] sm:$0xf]
      %v135 = vld [vmem:[%s3 + $0x24] sm:$0xf]
      %v136 = vld [vmem:[%s3 + $0x28] sm:$0xf]
      %v137 = vld [vmem:[%s3 + $0x2c] sm:$0xf]
      %v138 = vld [vmem:[%s3 + $0x30] sm:$0xf]
      %v139 = vld [vmem:[%s3 + $0x34] sm:$0xf]
      %v140 = vld [vmem:[%s3 + $0x38] sm:$0xf]
      %v141 = vld [vmem:[%s3 + $0x3c] sm:$0xf]
      %v142 = vld [vmem:[%s4] sm:$0x1]
      %v144 = vperm.slane %v142, 0
      %v162 = vunpack.c.l.b16 %v126
      %v163 = vunpack.c.l.b16 %v127
      %v164 = vunpack.c.l.b16 %v128
      %v165 = vunpack.c.l.b16 %v129
      %v166 = vunpack.c.l.b16 %v130
      %v167 = vunpack.c.l.b16 %v131
      %v168 = vunpack.c.l.b16 %v132
      %v169 = vunpack.c.l.b16 %v133
      %v170 = vunpack.c.l.b16 %v134
      %v171 = vunpack.c.l.b16 %v135
      %v172 = vunpack.c.l.b16 %v136
      %v173 = vunpack.c.l.b16 %v137
      %v174 = vunpack.c.l.b16 %v138
      %v175 = vunpack.c.l.b16 %v139
      %v176 = vunpack.c.l.b16 %v140
      %v177 = vunpack.c.l.b16 %v141
      %v178 = vpack.c.b16 %v163, %v162
      %v179 = vpack.c.b16 %v165, %v164
      %v180 = vpack.c.b16 %v167, %v166
      %v181 = vpack.c.b16 %v169, %v168
      %v182 = vpack.c.b16 %v171, %v170
      %v183 = vpack.c.b16 %v173, %v172
      %v184 = vpack.c.b16 %v175, %v174
      %v185 = vpack.c.b16 %v177, %v176
      %194 = vmatpush.bf16.msra.mxu0 %v185
      %195 = vmatpush.bf16.msra.mxu0 %v184
      %196 = vmatpush.bf16.msra.mxu0 %v183
      %197 = vmatpush.bf16.msra.mxu0 %v182
      %198 = vmatpush.bf16.msra.mxu0 %v181
      %199 = vmatpush.bf16.msra.mxu0 %v180
      %200 = vmatpush.bf16.msra.mxu0 %v179
      %201 = vmatpush.bf16.msra.mxu0 %v178
      %202 = vmatmul.bf16.gmra.mxu0 %v125
      %v203 = vpop.f32.mrf.mxu0
      %v204 = vadd.f32 %v144, %v203
      %v205 = vpop.f32.mrf.mxu0
      %206 = vdwg.mxu0
      %v207 = vmax.f32 %v204, 0.0
      %v208 = vpack.c.bf16 %v207, %v207
      %v209 = vld [vmem:[%s5] sm:$0xff]
      %v210 = vld [vmem:[%s5 + $0x8] sm:$0xff]
      %v211 = vld [vmem:[%s5 + $0x10] sm:$0xff]
      %v212 = vld [vmem:[%s5 + $0x18] sm:$0xff]
      %v213 = vld [vmem:[%s5 + $0x20] sm:$0xff]
      %v214 = vld [vmem:[%s5 + $0x28] sm:$0xff]
      %v215 = vld [vmem:[%s5 + $0x30] sm:$0xff]
      %v216 = vld [vmem:[%s5 + $0x38] sm:$0xff]
      %v217 = vld [vmem:[%s5 + $0x40] sm:$0xff]
      %v218 = vld [vmem:[%s5 + $0x48] sm:$0xff]
      %v219 = vld [vmem:[%s5 + $0x50] sm:$0xff]
      %v220 = vld [vmem:[%s5 + $0x58] sm:$0xff]
      %v221 = vld [vmem:[%s5 + $0x60] sm:$0xff]
      %v222 = vld [vmem:[%s5 + $0x68] sm:$0xff]
      %v223 = vld [vmem:[%s5 + $0x70] sm:$0xff]
      %v224 = vld [vmem:[%s5 + $0x78] sm:$0xff]
      %v225 = vld [vmem:[%s6] sm:$0x3]
      %v227 = vperm.slane %v225, 0
      %v228 = vperm.slane %v225, 1
      %v247 = vunpack.c.l.b16 %v209
      %v248 = vunpack.c.h.b16 %v209
      %v249 = vunpack.c.l.b16 %v210
      %v250 = vunpack.c.h.b16 %v210
      %v251 = vunpack.c.l.b16 %v211
      %v252 = vunpack.c.h.b16 %v211
      %v253 = vunpack.c.l.b16 %v212
      %v254 = vunpack.c.h.b16 %v212
      %v255 = vunpack.c.l.b16 %v213
      %v256 = vunpack.c.h.b16 %v213
      %v257 = vunpack.c.l.b16 %v214
      %v258 = vunpack.c.h.b16 %v214
      %v259 = vunpack.c.l.b16 %v215
      %v260 = vunpack.c.h.b16 %v215
      %v261 = vunpack.c.l.b16 %v216
      %v262 = vunpack.c.h.b16 %v216
      %v263 = vunpack.c.l.b16 %v217
      %v264 = vunpack.c.h.b16 %v217
      %v265 = vunpack.c.l.b16 %v218
      %v266 = vunpack.c.h.b16 %v218
      %v267 = vunpack.c.l.b16 %v219
      %v268 = vunpack.c.h.b16 %v219
      %v269 = vunpack.c.l.b16 %v220
      %v270 = vunpack.c.h.b16 %v220
      %v271 = vunpack.c.l.b16 %v221
      %v272 = vunpack.c.h.b16 %v221
      %v273 = vunpack.c.l.b16 %v222
      %v274 = vunpack.c.h.b16 %v222
      %v275 = vunpack.c.l.b16 %v223
      %v276 = vunpack.c.h.b16 %v223
      %v277 = vunpack.c.l.b16 %v224
      %v278 = vunpack.c.h.b16 %v224
      %v279 = vpack.c.b16 %v249, %v247
      %v280 = vpack.c.b16 %v250, %v248
      %v281 = vpack.c.b16 %v253, %v251
      %v282 = vpack.c.b16 %v254, %v252
      %v283 = vpack.c.b16 %v257, %v255
      %v284 = vpack.c.b16 %v258, %v256
      %v285 = vpack.c.b16 %v261, %v259
      %v286 = vpack.c.b16 %v262, %v260
      %v287 = vpack.c.b16 %v265, %v263
      %v288 = vpack.c.b16 %v266, %v264
      %v289 = vpack.c.b16 %v269, %v267
      %v290 = vpack.c.b16 %v270, %v268
      %v291 = vpack.c.b16 %v273, %v271
      %v292 = vpack.c.b16 %v274, %v272
      %v293 = vpack.c.b16 %v277, %v275
      %v294 = vpack.c.b16 %v278, %v276
      %311 = vmatpush.bf16.msra.mxu0 %v293
      %312 = vmatpush.bf16.msra.mxu0 %v291
      %313 = vmatpush.bf16.msra.mxu0 %v289
      %314 = vmatpush.bf16.msra.mxu0 %v287
      %315 = vmatpush.bf16.msra.mxu0 %v285
      %316 = vmatpush.bf16.msra.mxu0 %v283
      %317 = vmatpush.bf16.msra.mxu0 %v281
      %318 = vmatpush.bf16.msra.mxu0 %v279
      %319 = vmatmul.bf16.gmra.mxu0 %v208
      %v320 = vpop.f32.mrf.mxu0
      %v321 = vadd.f32 %v227, %v320
      %v322 = vpop.f32.mrf.mxu0
      %323 = vdwg.mxu0
      %324 = vmatpush.bf16.msra.mxu0 %v294
      %325 = vmatpush.bf16.msra.mxu0 %v292
      %326 = vmatpush.bf16.msra.mxu0 %v290
      %327 = vmatpush.bf16.msra.mxu0 %v288
      %328 = vmatpush.bf16.msra.mxu0 %v286
      %329 = vmatpush.bf16.msra.mxu0 %v284
      %330 = vmatpush.bf16.msra.mxu0 %v282
      %331 = vmatpush.bf16.msra.mxu0 %v280
      %332 = vmatmul.bf16.gmra.mxu0 %v208
      %v333 = vpop.f32.mrf.mxu0
      %v334 = vadd.f32 %v228, %v333
      %v335 = vpop.f32.mrf.mxu0
      %336 = vdwg.mxu0
      %v337 = vadd.f32 %v334, 1.0
      %v338 = vmul.f32 %v321, %v321
      %v339 = vsub.f32 %v337, %v338
      %v340 = vmul.f32 %v334, 1.442695
      %v341 = vpow.pop %v340
      %v342 = vsub.f32 %v339, %v341
      %343 = vadd.xlane.f32.xlu0 %v342
      %v344 = vpop.xlane.xlu0 %343
      %v345 = vmul.f32 %v344, -0.5
      %v346 = vrot.slane %v345, 4
      %v347 = vadd.f32 %v345, %v346
      %v348 = vrot.slane %v347, 2
      %v349 = vadd.f32 %v347, %v348
      %v350 = vrot.slane %v349, 1
      %v351 = vadd.f32 %v349, %v350
      %v352 = vrcp.pop 8.0
      %v353 = vmul.f32 8.0, %v352
      %v354 = vsub.f32 1.0, %v353
      %v355 = vmul.f32 %v352, %v354
      %v356 = vadd.f32 %v352, %v355
      %vm357 = vweird.f32 %v352
      %v358 = vsel %vm357, %v352, %v356
      %v359 = vmul.f32 %v351, %v358
      %vm360 = vcmask 0
      %361 = vst.msk [vmem:[#allocation3] sm:$0x1] %vm360, %v359
      %v362 = vlaneseq
      %v363 = vand.u32 %v362, 127
      %vm364 = vcmp.lt.s32.totalorder %v363, 8
      %v365 = vsel %vm364, %v321, -1e+30
      %366 = vmax.xlane.f32.xlu0 %v365
      %v367 = vpop.xlane.xlu0 %366
      %v368 = vsub.f32 %v365, %v367
      %v369 = vmul.f32 %v368, 1.442695
      %v370 = vpow.pop %v369
      %371 = vadd.xlane.f32.xlu0 %v370
      %v372 = vpop.xlane.xlu0 %371
      %v373 = vrcp.pop %v372
      %v374 = vmul.f32 %v372, %v373
      %v375 = vsub.f32 1.0, %v374
      %v376 = vmul.f32 %v373, %v375
      %v377 = vadd.f32 %v373, %v376
      %vm378 = vweird.f32 %v372
      %vm379 = vweird.f32 %v373
      %vm380 = vmor %vm378, %vm379
      %v381 = vsel %vm380, %v373, %v377
      %v382 = vand.u32 2147483647, %v372
      %vm383 = vcmp.eq.f32.partialorder %v382, 8.507059e+37
      %v384 = vand.u32 %v372, 2147483648
      %v385 = vor.u32 1.1754944e-38, %v384
      %v386 = vsel %vm383, %v385, %v381
      %v387 = vmul.f32 %v370, %v386
      %388 = vst [vmem:[%s7] sm:$0xff] %v387
    $region37: #{etm_forward.2} parent=1 // pred_fallthru
      _
    // Predicated region
    $region38: #{etm_forward.2} parent=1 // pred_check
      _
    $region39: #{etm_forward.2} parent=1 // pred_check_branch
      %390 = sbr.rel (0) target = $region41
    $region40: #{etm_forward.2} parent=1 // pred_region
      _
    $region41: #{etm_forward.2} parent=1 // pred_fallthru
      _
    // Predicated region
    $region42: #{etm_forward.2} parent=1 // pred_check
      _
    $region43: #{etm_forward.2} parent=1 // pred_check_branch
      %392 = sbr.rel (0) target = $region45
    $region44: #{etm_forward.2} parent=1 // pred_region
      %394 = vsyncadd [#allocation4], 0
      %s396 = sshll.u32 [#allocation3], 4
      %s397 = int_to_ptr.vmem [resolvable:$true] %s396
      %s398 = sshll.u32 %s8, 4
      %s399 = int_to_ptr.hbm [resolvable:$true] %s398
      %401 = dma.vmem_to_hbm [thread:$0]  %s397, 16, %s399, [#allocation4]
    $region45: #{etm_forward.2} parent=1 // pred_fallthru
      _
    // Predicated region
    $region46: #{etm_forward.2} parent=1 // pred_check
      _
    $region47: #{etm_forward.2} parent=1 // pred_check_branch
      %403 = sbr.rel (0) target = $region49
    $region48: #{etm_forward.2} parent=1 // pred_region
      _
    $region49: #{etm_forward.2} parent=1 // pred_fallthru
      _
    // Predicated region
    $region50: #{etm_forward.2} parent=1 // pred_check
      _
    $region51: #{etm_forward.2} parent=1 // pred_check_branch
      %405 = sbr.rel (0) target = $region53
    $region52: #{etm_forward.2} parent=1 // pred_region
      %407 = dma.done [#allocation4], 16
    $region53: #{etm_forward.2} parent=1 // pred_fallthru
      _
    %408 = vsyncpa [#allocation4], 1

// kernel: etm_forward.3
$region0: #{etm_forward.3}
  #allocation0 [shape = 'u32[]', space=smem, size = 0x4, offset = 0x4, fixed_abs, tag = 'smem constant byte address 0x4 - core index']
  #allocation1 [shape = 'u32[72,128]{1,0:T(1,128)}', space=vmem, size = 0x9000, scoped, tag = 'internal scratch']
  #allocation2 [shape = 'f32[8,1]{1,0:T(8,128)}', space=vmem, size = 0x1000, scoped, tag = 'scratch operand']
  #allocation3 [shape = 'f32[8,1]{1,0:T(8,128)}', space=vmem, size = 0x1000, scoped, tag = 'scratch operand']
  #allocation4 [shape = 'f32[1,1]{1,0:T(1,128)}', space=vmem, size = 0x200, scoped, tag = 'scratch operand']
  #allocation5 [shape = 'f32[1,8,128]{2,1,0:T(8,128)}', space=vmem, size = 0x1000, scoped, tag = 'scratch operand']
  #allocation6 [shape = 's32[1]{0}', space=sflag, size = 0x4, scoped, tag = 'scoped memory for etm_forward.3']
  #allocation7 [shape = 'u8[512]{0}', space=smem, size = 0x200, scoped, tag = 'prefetched SMEM operand 0']
  #allocation8 [shape = 'u8[512]{0}', space=smem, size = 0x200, scoped, tag = 'prefetched SMEM operand 1']
  %s0 = inlined_call_operand.vmem [shape: s32[2], index: 0, kind: input, shape index: {}]
  %s1 = inlined_call_operand.vmem [shape: s32[2], index: 1, kind: input, shape index: {}]
  %s2 = inlined_call_operand.vmem [shape: bf16[8,8], index: 2, kind: input, shape index: {}]
  %s3 = inlined_call_operand.vmem [shape: bf16[2,8,128], index: 3, kind: input, shape index: {}]
  %s4 = inlined_call_operand.vmem [shape: bf16[2,128,128], index: 4, kind: input, shape index: {}]
  %s5 = inlined_call_operand.vmem [shape: f32[2,8,128], index: 5, kind: input, shape index: {}]
  %s6 = inlined_call_operand.vmem [shape: f32[2,8,128], index: 6, kind: output, shape index: {}]
  %s7 = sld [smem:[#allocation0]]
  $region65: #{etm_forward.3} parent=0
    _
  %s9 = ssub.s32 1, %s7
  %s10 = scalar_select 0, %s9, %s7
  %s12 = sshll.u32 %s0, 4
  %s13 = int_to_ptr.vmem [resolvable:$true] %s12
  %15 = dma.vmem_to_smem %s13, 16, [#allocation7], [#allocation6]
  %s17 = sshll.u32 %s1, 4
  %s18 = int_to_ptr.vmem [resolvable:$true] %s17
  %20 = dma.vmem_to_smem %s18, 16, [#allocation8], [#allocation6]
  %22 = dma.done [#allocation6], 32
  %23 = sfence
  loop: start=0, step=1, limit=6
  $region2: #{etm_forward.3} parent=0 // loop_pre_header
    _
  $region3: #{etm_forward.3} parent=0 // loop_header
    %s25 = sphi 0, %s29
    %p26 = scmp.ge.s32.totalorder %s25, 6
    %s32 = sphi 0, %s51
    %s33 = sphi 0, %s47
    %s34 = sphi 0, %s43
    %s35 = sphi 0, %s32
    %s36 = sphi 0, %s33
    %s37 = sphi 0, %s34
    %s38 = sphi 0, %s35
    %s39 = sphi 0, %s36
    %s40 = sphi 0, %s37
    %s52 = sphi 0, %s52
    %s54 = sphi 0, %s52
    %s55 = sphi 0, %s54
    %s69 = sphi 0, %s55
    %s75 = sphi 0, %s77
    %s78 = sphi 0, %s75
    %s79 = sphi 0, %s78
    %s95 = sphi 0, %s79
    %s115 = sphi 0, %s117
    %s118 = sphi 0, %s115
    %s119 = sphi 0, %s118
    %s135 = sphi 0, %s119
    %s153 = sphi 0, %s155
    %s156 = sphi 0, %s153
    %s157 = sphi 0, %s156
    %s173 = sphi 0, %s157
    %s179 = sphi 0, %s181
    %s182 = sphi 0, %s179
    %s183 = sphi 0, %s182
    %s199 = sphi 0, %s183
  $region4: #{etm_forward.3} parent=0 // loop_header_branch
    %28 = sbr.rel (%p26) target = $region8
  $region5: #{etm_forward.3} parent=0 // loop_body
    %s30 = ssub.s32 %s25, 1
    %s31 = ssub.s32 %s25, 2
    %s41 = sadd.s32 1, %s34
    %p42 = scmp.ge.s32.totalorder %s41, 1
    %s43 = scalar_select %p42, 0, %s41
    %s44 = sadd.s32 1, %s33
    %s45 = scalar_select %p42, %s44, %s33
    %p46 = scmp.ge.s32.totalorder %s45, 2
    %s47 = scalar_select %p46, 0, %s45
    %s48 = sadd.s32 1, %s32
    %s49 = scalar_select %p46, %s48, %s32
    %p50 = scmp.ge.s32.totalorder %s49, 2
    %s51 = scalar_select %p50, 0, %s49
    %s53 = sadd.s32 %s52, 1
    %p56 = scmp.eq.s32.totalorder %s25, 3
    %p57 = scmp.ne.s32.totalorder %s52, %s54
    %p58 = scmp.eq.s32.totalorder %s25, 0
    %p59 = por %p57, %p58
    %p60 = scmp.ne.s32.totalorder %s52, %s54
    %p61 = scmp.eq.s32.totalorder %s30, 3
    %p62 = por %p60, %p61
    %p63 = scmp.ne.s32.totalorder %s54, %s55
    %p64 = scmp.eq.s32.totalorder %s30, 0
    %p65 = por %p63, %p64
    %p66 = scmp.ne.s32.totalorder %s54, %s55
    %p67 = scmp.eq.s32.totalorder %s31, 3
    %p68 = por %p66, %p67
    %p70 = scmp.ne.s32.totalorder %s55, %s69
    %p71 = scmp.eq.s32.totalorder %s31, 0
    %p72 = por %p70, %p71
    %s73 = ssub.s32 %s32, %s51
    %p74 = scmp.eq.s32.totalorder %s73, 0
    %s76 = sadd.s32 %s75, 1
    %s77 = scalar_select %p74, %s75, %s76
    %p80 = pneg %p74
    %p81 = scmp.eq.s32.totalorder %s25, 3
    %p82 = por %p80, %p81
    %p83 = scmp.ne.s32.totalorder %s75, %s78
    %p84 = scmp.eq.s32.totalorder %s25, 0
    %p85 = por %p83, %p84
    %p86 = scmp.ne.s32.totalorder %s75, %s78
    %p87 = scmp.eq.s32.totalorder %s30, 3
    %p88 = por %p86, %p87
    %p89 = scmp.ne.s32.totalorder %s78, %s79
    %p90 = scmp.eq.s32.totalorder %s30, 0
    %p91 = por %p89, %p90
    %p92 = scmp.ne.s32.totalorder %s78, %s79
    %p93 = scmp.eq.s32.totalorder %s31, 3
    %p94 = por %p92, %p93
    %p96 = scmp.ne.s32.totalorder %s79, %s95
    %p97 = scmp.eq.s32.totalorder %s31, 0
    %p98 = por %p96, %p97
    %s99 = sld [smem:[#allocation8 + %s32]]
    %s100 = ssub.s32 %s99, 1
    %p101 = scmp.lt.s32.totalorder %s34, %s100
    %s102 = scalar_select %p101, %s34, %s100
    %s103 = ssub.s32 1, %s33
    %s104 = smul.u32 %s102, %s103
    %s105 = sld [smem:[#allocation8 + %s51]]
    %s106 = ssub.s32 %s105, 1
    %p107 = scmp.lt.s32.totalorder %s43, %s106
    %s108 = scalar_select %p107, %s43, %s106
    %s109 = ssub.s32 1, %s47
    %s110 = smul.u32 %s108, %s109
    %s111 = ssub.s32 %s32, %s51
    %s112 = ssub.s32 %s104, %s110
    %s113 = sor.u32 %s111, %s112
    %p114 = scmp.eq.s32.totalorder %s113, 0
    %s116 = sadd.s32 %s115, 1
    %s117 = scalar_select %p114, %s115, %s116
    %p120 = pneg %p114
    %p121 = scmp.eq.s32.totalorder %s25, 3
    %p122 = por %p120, %p121
    %p123 = scmp.ne.s32.totalorder %s115, %s118
    %p124 = scmp.eq.s32.totalorder %s25, 0
    %p125 = por %p123, %p124
    %p126 = scmp.ne.s32.totalorder %s115, %s118
    %p127 = scmp.eq.s32.totalorder %s30, 3
    %p128 = por %p126, %p127
    %p129 = scmp.ne.s32.totalorder %s118, %s119
    %p130 = scmp.eq.s32.totalorder %s30, 0
    %p131 = por %p129, %p130
    %p132 = scmp.ne.s32.totalorder %s118, %s119
    %p133 = scmp.eq.s32.totalorder %s31, 3
    %p134 = por %p132, %p133
    %p136 = scmp.ne.s32.totalorder %s119, %s135
    %p137 = scmp.eq.s32.totalorder %s31, 0
    %p138 = por %p136, %p137
    %s139 = sld [smem:[#allocation8 + %s32]]
    %s140 = ssub.s32 %s139, 1
    %p141 = scmp.lt.s32.totalorder %s34, %s140
    %s142 = scalar_select %p141, %s34, %s140
    %s143 = smul.u32 %s142, %s33
    %s144 = sld [smem:[#allocation8 + %s51]]
    %s145 = ssub.s32 %s144, 1
    %p146 = scmp.lt.s32.totalorder %s43, %s145
    %s147 = scalar_select %p146, %s43, %s145
    %s148 = smul.u32 %s147, %s47
    %s149 = ssub.s32 %s32, %s51
    %s150 = ssub.s32 %s143, %s148
    %s151 = sor.u32 %s149, %s150
    %p152 = scmp.eq.s32.totalorder %s151, 0
    %s154 = sadd.s32 %s153, 1
    %s155 = scalar_select %p152, %s153, %s154
    %p158 = pneg %p152
    %p159 = scmp.eq.s32.totalorder %s25, 3
    %p160 = por %p158, %p159
    %p161 = scmp.ne.s32.totalorder %s153, %s156
    %p162 = scmp.eq.s32.totalorder %s25, 0
    %p163 = por %p161, %p162
    %p164 = scmp.ne.s32.totalorder %s153, %s156
    %p165 = scmp.eq.s32.totalorder %s30, 3
    %p166 = por %p164, %p165
    %p167 = scmp.ne.s32.totalorder %s156, %s157
    %p168 = scmp.eq.s32.totalorder %s30, 0
    %p169 = por %p167, %p168
    %p170 = scmp.ne.s32.totalorder %s156, %s157
    %p171 = scmp.eq.s32.totalorder %s31, 3
    %p172 = por %p170, %p171
    %p174 = scmp.ne.s32.totalorder %s157, %s173
    %p175 = scmp.eq.s32.totalorder %s31, 0
    %p176 = por %p174, %p175
    %s177 = ssub.s32 %s32, %s51
    %p178 = scmp.eq.s32.totalorder %s177, 0
    %s180 = sadd.s32 %s179, 1
    %s181 = scalar_select %p178, %s179, %s180
    %p184 = pneg %p178
    %p185 = scmp.eq.s32.totalorder %s25, 3
    %p186 = por %p184, %p185
    %p187 = scmp.ne.s32.totalorder %s179, %s182
    %p188 = scmp.eq.s32.totalorder %s25, 0
    %p189 = por %p187, %p188
    %p190 = scmp.ne.s32.totalorder %s179, %s182
    %p191 = scmp.eq.s32.totalorder %s30, 3
    %p192 = por %p190, %p191
    %p193 = scmp.ne.s32.totalorder %s182, %s183
    %p194 = scmp.eq.s32.totalorder %s30, 0
    %p195 = por %p193, %p194
    %p196 = scmp.ne.s32.totalorder %s182, %s183
    %p197 = scmp.eq.s32.totalorder %s31, 3
    %p198 = por %p196, %p197
    %p200 = scmp.ne.s32.totalorder %s183, %s199
    %p201 = scmp.eq.s32.totalorder %s31, 0
    %p202 = por %p200, %p201
    %p203 = scmp.le.s32.totalorder 1, %s25
    %p204 = scmp.lt.s32.totalorder %s25, 5
    %p205 = pnand %p203, %p204
    %p206 = pneg %p205
    // Predicated region
    $region9: #{etm_forward.3} parent=5 // pred_check
      _
    $region10: #{etm_forward.3} parent=5 // pred_check_branch
      %208 = sbr.rel (%p205) target = $region12
    $region11: #{etm_forward.3} parent=5 // pred_region
      %s209 = ssub.s32 %s25, 1
      // Predicated region
      $region13: #{etm_forward.3} parent=11 // pred_check
        %p210 = pneg %p65
      $region14: #{etm_forward.3} parent=11 // pred_check_branch
        %212 = sbr.rel (%p210) target = $region16
      $region15: #{etm_forward.3} parent=11 // pred_region
        _
      $region16: #{etm_forward.3} parent=11 // pred_fallthru
        _
    $region12: #{etm_forward.3} parent=5 // pred_fallthru
      _
    %p213 = scmp.lt.s32.totalorder %s25, 4
    // Predicated region
    $region17: #{etm_forward.3} parent=5 // pred_check
      %p214 = pneg %p213
    $region18: #{etm_forward.3} parent=5 // pred_check_branch
      %216 = sbr.rel (%p214) target = $region20
    $region19: #{etm_forward.3} parent=5 // pred_region
      // Predicated region
      $region21: #{etm_forward.3} parent=19 // pred_check
        %p217 = pneg %p85
      $region22: #{etm_forward.3} parent=19 // pred_check_branch
        %219 = sbr.rel (%p217) target = $region24
      $region23: #{etm_forward.3} parent=19 // pred_region
        %p220 = scmp.lt.s32.totalorder %s32, 1
        %s221 = scalar_select %p220, %s32, 1
        %s222 = smul.addr %s221, 4
        %s223 = scalar_lea.vmem %s3, %s222
      $region24: #{etm_forward.3} parent=19 // pred_fallthru
        _
      // Predicated region
      $region25: #{etm_forward.3} parent=19 // pred_check
        %p224 = pneg %p125
      $region26: #{etm_forward.3} parent=19 // pred_check_branch
        %226 = sbr.rel (%p224) target = $region28
      $region27: #{etm_forward.3} parent=19 // pred_region
        %s227 = sld [smem:[#allocation8 + %s32]]
        %s228 = ssub.s32 %s227, 1
        %p229 = scmp.lt.s32.totalorder %s34, %s228
        %s230 = scalar_select %p229, %s34, %s228
        %s231 = ssub.s32 1, %s33
        %s232 = smul.u32 %s230, %s231
        %s233 = smul.u32 16, %s232
        %p234 = scmp.lt.s32.totalorder %s32, 1
        %s235 = scalar_select %p234, %s32, 1
        %p236 = scmp.lt.s32.totalorder %s233, 15
        %s237 = scalar_select %p236, %s233, 15
        %s238 = smul.addr %s235, 16
        %s239 = sadd.s32 %s237, %s238
        %s240 = smul.addr %s239, 4
        %s241 = scalar_lea.vmem %s4, %s240
        %s242 = sld [smem:[#allocation8 + %s32]]
        %s243 = ssub.s32 %s242, 1
        %p244 = scmp.lt.s32.totalorder %s34, %s243
        %s245 = scalar_select %p244, %s34, %s243
        %s246 = ssub.s32 1, %s33
        %s247 = smul.u32 %s245, %s246
        %s248 = smul.u32 16, %s247
      $region28: #{etm_forward.3} parent=19 // pred_fallthru
        _
      // Predicated region
      $region29: #{etm_forward.3} parent=19 // pred_check
        %p249 = pneg %p163
      $region30: #{etm_forward.3} parent=19 // pred_check_branch
        %251 = sbr.rel (%p249) target = $region32
      $region31: #{etm_forward.3} parent=19 // pred_region
        %s252 = sld [smem:[#allocation8 + %s32]]
        %s253 = ssub.s32 %s252, 1
        %p254 = scmp.lt.s32.totalorder %s34, %s253
        %s255 = scalar_select %p254, %s34, %s253
        %s256 = smul.u32 %s255, %s33
        %p257 = scmp.lt.s32.totalorder %s32, 1
        %s258 = scalar_select %p257, %s32, 1
        %p259 = scmp.lt.s32.totalorder %s256, 0
        %s260 = scalar_select %p259, %s256, 0
        %s261 = sadd.s32 %s260, %s258
        %s262 = smul.addr %s261, 8
        %s263 = scalar_lea.vmem %s5, %s262
        %s264 = sld [smem:[#allocation8 + %s32]]
        %s265 = ssub.s32 %s264, 1
        %p266 = scmp.lt.s32.totalorder %s34, %s265
        %s267 = scalar_select %p266, %s34, %s265
        %s268 = smul.u32 %s267, %s33
      $region32: #{etm_forward.3} parent=19 // pred_fallthru
        _
    $region20: #{etm_forward.3} parent=5 // pred_fallthru
      _
    %p269 = scmp.le.s32.totalorder 1, %s25
    %p270 = scmp.lt.s32.totalorder %s25, 5
    %p271 = pnand %p269, %p270
    %p272 = pneg %p271
    // Predicated region
    $region33: #{etm_forward.3} parent=5 // pred_check
      _
    $region34: #{etm_forward.3} parent=5 // pred_check_branch
      %274 = sbr.rel (%p271) target = $region36
    $region35: #{etm_forward.3} parent=5 // pred_region
      %s275 = ssub.s32 %s25, 1
      %p276 = pneg %p65
      %p277 = pneg %p62
      %p278 = scmp.lt.s32.totalorder %s35, 1
      %s279 = scalar_select %p278, %s35, 1
      %s280 = smul.addr %s279, 4
      %s281 = scalar_lea.vmem %s3, %s280
      %p282 = pneg %p91
      %p283 = pneg %p88
      %s284 = sld [smem:[#allocation8 + %s35]]
      %s285 = ssub.s32 %s284, 1
      %p286 = scmp.lt.s32.totalorder %s37, %s285
      %s287 = scalar_select %p286, %s37, %s285
      %s288 = ssub.s32 1, %s36
      %s289 = smul.u32 %s287, %s288
      %s290 = smul.u32 16, %s289
      %p291 = scmp.lt.s32.totalorder %s35, 1
      %s292 = scalar_select %p291, %s35, 1
      %p293 = scmp.lt.s32.totalorder %s290, 15
      %s294 = scalar_select %p293, %s290, 15
      %s295 = smul.addr %s292, 16
      %s296 = sadd.s32 %s294, %s295
      %s297 = smul.addr %s296, 4
      %s298 = scalar_lea.vmem %s4, %s297
      %p299 = pneg %p131
      %p300 = pneg %p128
      %s301 = sld [smem:[#allocation8 + %s35]]
      %s302 = ssub.s32 %s301, 1
      %p303 = scmp.lt.s32.totalorder %s37, %s302
      %s304 = scalar_select %p303, %s37, %s302
      %s305 = smul.u32 %s304, %s36
      %p306 = scmp.lt.s32.totalorder %s35, 1
      %s307 = scalar_select %p306, %s35, 1
      %p308 = scmp.lt.s32.totalorder %s305, 0
      %s309 = scalar_select %p308, %s305, 0
      %s310 = sadd.s32 %s309, %s307
      %s311 = smul.addr %s310, 8
      %s312 = scalar_lea.vmem %s5, %s311
      %p313 = pneg %p169
      %p314 = pneg %p166
      %p315 = pneg %p195
      %p316 = pneg %p192
      %p317 = scmp.lt.s32.totalorder %s35, 1
      %s318 = scalar_select %p317, %s35, 1
      %s319 = smul.addr %s318, 8
      %s320 = scalar_lea.vmem %s6, %s319
      %p321 = scmp.lt.s32.totalorder %s35, 1
      %s322 = scalar_select %p321, %s35, 1
      %s323 = smul.addr %s322, 4
      %s324 = scalar_lea.vmem %s3, %s323
      %s325 = sld [smem:[#allocation8 + %s35]]
      %s326 = ssub.s32 %s325, 1
      %p327 = scmp.lt.s32.totalorder %s37, %s326
      %s328 = scalar_select %p327, %s37, %s326
      %s329 = ssub.s32 1, %s36
      %s330 = smul.u32 %s328, %s329
      %s331 = smul.u32 16, %s330
      %p332 = scmp.lt.s32.totalorder %s35, 1
      %s333 = scalar_select %p332, %s35, 1
      %p334 = scmp.lt.s32.totalorder %s331, 15
      %s335 = scalar_select %p334, %s331, 15
      %s336 = smul.addr %s333, 16
      %s337 = sadd.s32 %s335, %s336
      %s338 = smul.addr %s337, 4
      %s339 = scalar_lea.vmem %s4, %s338
      %s340 = sld [smem:[#allocation8 + %s35]]
      %s341 = ssub.s32 %s340, 1
      %p342 = scmp.lt.s32.totalorder %s37, %s341
      %s343 = scalar_select %p342, %s37, %s341
      %s344 = ssub.s32 1, %s36
      %s345 = smul.u32 %s343, %s344
      %s346 = smul.u32 16, %s345
      %s347 = sld [smem:[#allocation8 + %s35]]
      %s348 = ssub.s32 %s347, 1
      %p349 = scmp.lt.s32.totalorder %s37, %s348
      %s350 = scalar_select %p349, %s37, %s348
      %s351 = smul.u32 %s350, %s36
      %p352 = scmp.lt.s32.totalorder %s35, 1
      %s353 = scalar_select %p352, %s35, 1
      %p354 = scmp.lt.s32.totalorder %s351, 0
      %s355 = scalar_select %p354, %s351, 0
      %s356 = sadd.s32 %s355, %s353
      %s357 = smul.addr %s356, 8
      %s358 = scalar_lea.vmem %s5, %s357
      %s359 = sld [smem:[#allocation8 + %s35]]
      %s360 = ssub.s32 %s359, 1
      %p361 = scmp.lt.s32.totalorder %s37, %s360
      %s362 = scalar_select %p361, %s37, %s360
      %s363 = smul.u32 %s362, %s36
      %p364 = scmp.lt.s32.totalorder %s35, 1
      %s365 = scalar_select %p364, %s35, 1
      %s366 = smul.addr %s365, 8
      %s367 = scalar_lea.vmem %s6, %s366
      %s369 = sld [smem:[#allocation8 + %s35]]
      %p370 = scmp.lt.s32.totalorder %s37, %s369
      %p371 = scmp.eq.s32.totalorder %s36, 0
      %p372 = scmp.eq.s32.totalorder %s37, 0
      %p373 = pnand %p371, %p372
      %p374 = pneg %p373
      // Predicated region
      $region37: #{etm_forward.3} parent=35 // pred_check
        _
      $region38: #{etm_forward.3} parent=35 // pred_check_branch
        %376 = sbr.rel (%p373) target = $region40
      $region39: #{etm_forward.3} parent=35 // pred_region
        %vm377 = vcmask 7168
        %378 = vst.msk [vmem:[#allocation2] sm:$0xff] %vm377, -1e+30
        %379 = vst.msk [vmem:[#allocation3] sm:$0xff] %vm377, 0.0
        %vm380 = vcmask 0
        %381 = vst.msk [vmem:[#allocation4] sm:$0x1] %vm380, 0.0
      $region40: #{etm_forward.3} parent=35 // pred_fallthru
        _
      %p382 = pnand %p371, %p370
      %p383 = pneg %p382
      // Predicated region
      $region41: #{etm_forward.3} parent=35 // pred_check
        _
      $region42: #{etm_forward.3} parent=35 // pred_check_branch
        %385 = sbr.rel (%p382) target = $region44
      $region43: #{etm_forward.3} parent=35 // pred_region
        %v386 = vld [vmem:[%s324] sm:$0xf]
        %v387 = vld [vmem:[%s339] sm:$0xf]
        %v388 = vld [vmem:[%s339 + $0x4] sm:$0xf]
        %v389 = vld [vmem:[%s339 + $0x8] sm:$0xf]
        %v390 = vld [vmem:[%s339 + $0xc] sm:$0xf]
        %v391 = vld [vmem:[%s339 + $0x10] sm:$0xf]
        %v392 = vld [vmem:[%s339 + $0x14] sm:$0xf]
        %v393 = vld [vmem:[%s339 + $0x18] sm:$0xf]
        %v394 = vld [vmem:[%s339 + $0x1c] sm:$0xf]
        %v395 = vld [vmem:[%s339 + $0x20] sm:$0xf]
        %v396 = vld [vmem:[%s339 + $0x24] sm:$0xf]
        %v397 = vld [vmem:[%s339 + $0x28] sm:$0xf]
        %v398 = vld [vmem:[%s339 + $0x2c] sm:$0xf]
        %v399 = vld [vmem:[%s339 + $0x30] sm:$0xf]
        %v400 = vld [vmem:[%s339 + $0x34] sm:$0xf]
        %v401 = vld [vmem:[%s339 + $0x38] sm:$0xf]
        %v402 = vld [vmem:[%s339 + $0x3c] sm:$0xf]
        %v419 = vunpack.c.l.b16 %v387
        %v420 = vunpack.c.l.b16 %v388
        %v421 = vunpack.c.l.b16 %v389
        %v422 = vunpack.c.l.b16 %v390
        %v423 = vunpack.c.l.b16 %v391
        %v424 = vunpack.c.l.b16 %v392
        %v425 = vunpack.c.l.b16 %v393
        %v426 = vunpack.c.l.b16 %v394
        %v427 = vunpack.c.l.b16 %v395
        %v428 = vunpack.c.l.b16 %v396
        %v429 = vunpack.c.l.b16 %v397
        %v430 = vunpack.c.l.b16 %v398
        %v431 = vunpack.c.l.b16 %v399
        %v432 = vunpack.c.l.b16 %v400
        %v433 = vunpack.c.l.b16 %v401
        %v434 = vunpack.c.l.b16 %v402
        %v435 = vpack.c.b16 %v420, %v419
        %v436 = vpack.c.b16 %v422, %v421
        %v437 = vpack.c.b16 %v424, %v423
        %v438 = vpack.c.b16 %v426, %v425
        %v439 = vpack.c.b16 %v428, %v427
        %v440 = vpack.c.b16 %v430, %v429
        %v441 = vpack.c.b16 %v432, %v431
        %v442 = vpack.c.b16 %v434, %v433
        %451 = vmatpush.bf16.xpose.msra.mxu0 %v442
        %452 = vmatpush.bf16.xpose.msra.mxu0 %v441
        %453 = vmatpush.bf16.xpose.msra.mxu0 %v440
        %454 = vmatpush.bf16.xpose.msra.mxu0 %v439
        %455 = vmatpush.bf16.xpose.msra.mxu0 %v438
        %456 = vmatpush.bf16.xpose.msra.mxu0 %v437
        %457 = vmatpush.bf16.xpose.msra.mxu0 %v436
        %458 = vmatpush.bf16.xpose.msra.mxu0 %v435
        %459 = vmatmul.bf16.gmra.mxu0 %v386
        %v460 = vpop.f32.mrf.mxu0
        %v461 = vadd.f32 0.0, %v460
        %v462 = vpop.f32.mrf.mxu0
        %463 = vdwg.mxu0
        %s464 = smul.u32 %s37, 8
        %s465 = scalar_lea.vmem [#allocation5], %s464
        %466 = vst [vmem:[%s465] sm:$0xff] %v461
        %v467 = vld [vmem:[#allocation2] sm:$0xff]
        %468 = vmax.xlane.f32.xlu0 %v461
        %v469 = vpop.xlane.xlu0 %468
        %v470 = vmax.f32 %v467, %v469
        %472 = vset.pattern.permute.xlu0 0
        %473 = vperm.xlu0 %472, %v470
        %v474 = vpop.permute.xlu0 %473
        %v476 = vsub.f32 %v461, %v474
        %v477 = vmul.f32 %v476, 1.442695
        %v478 = vpow.pop %v477
        %s479 = smul.u32 %s37, 128
        %v480 = vlaneseq
        %v481 = vand.u32 %v480, 127
        %v482 = vstv %s479
        %v483 = vadd.s32 %v482, %v481
        %s484 = sld [smem:[#allocation7 + %s35]]
        %v485 = vstv %s484
        %vm486 = vcmp.lt.s32.totalorder %v483, %v485
        %v487 = vsel %vm486, %v478, 0.0
        %v488 = vld [vmem:[#allocation3] sm:$0xff]
        %v489 = vsub.f32 %v467, %v470
        %v490 = vmul.f32 %v489, 1.442695
        %v491 = vpow.pop %v490
        %v492 = vmul.f32 %v488, %v491
        %493 = vadd.xlane.f32.xlu0 %v487
        %v494 = vpop.xlane.xlu0 %493
        %v495 = vadd.f32 %v492, %v494
        %vm496 = vcmask 7168
        %497 = vst.msk [vmem:[#allocation3] sm:$0xff] %vm496, %v495
        %498 = vst.msk [vmem:[#allocation2] sm:$0xff] %vm496, %v470
      $region44: #{etm_forward.3} parent=35 // pred_fallthru
        _
      %p499 = scmp.eq.s32.totalorder %s36, 1
      %p500 = pnand %p499, %p370
      %p501 = pneg %p500
      // Predicated region
      $region45: #{etm_forward.3} parent=35 // pred_check
        _
      $region46: #{etm_forward.3} parent=35 // pred_check_branch
        %503 = sbr.rel (%p500) target = $region48
      $region47: #{etm_forward.3} parent=35 // pred_region
        %v504 = vld [vmem:[#allocation3] sm:$0xff]
        %v505 = vrcp.pop %v504
        %s506 = smul.u32 %s37, 8
        %s507 = scalar_lea.vmem [#allocation5], %s506
        %v508 = vld [vmem:[%s507] sm:$0xff]
        %v509 = vld [vmem:[#allocation2] sm:$0xff]
        %511 = vset.pattern.permute.xlu0 0
        %512 = vperm.xlu0 %511, %v509
        %v513 = vpop.permute.xlu0 %512
        %v515 = vsub.f32 %v508, %v513
        %v516 = vmul.f32 %v515, 1.442695
        %v517 = vpow.pop %v516
        %519 = vset.pattern.permute.xlu0 0
        %520 = vperm.xlu0 %519, %v505
        %v521 = vpop.permute.xlu0 %520
        %v523 = vmul.f32 %v517, %v521
        %v524 = vld [vmem:[%s2] sm:$0xf]
        %v525 = vpack.c.bf16 %v523, %v523
        %vm526 = vcmask 64512
        %v528 = vsel %vm526, %v524, 0
        %vm530 = vcmask 1043456
        %v532 = vsel %vm530, %v525, 0
        %534 = vmatpush.bf16.msra.mxu0 0
        %535 = vmatpush.bf16.msra.mxu0 0
        %536 = vmatpush.bf16.msra.mxu0 0
        %537 = vmatpush.bf16.msra.mxu0 0
        %538 = vmatpush.bf16.msra.mxu0 0
        %539 = vmatpush.bf16.msra.mxu0 0
        %540 = vmatpush.bf16.msra.mxu0 0
        %541 = vmatpush.bf16.msra.mxu0 %v532
        %542 = vmatmul.bf16.gmra.mxu0 %v528
        %v543 = vpop.f32.mrf.mxu0
        %v544 = vadd.f32 1e-06, %v543
        %v545 = vpop.f32.mrf.mxu0
        %546 = vdwg.mxu0
        %v547 = vlog2.pop %v544
        %v548 = vmul.f32 %v547, 0.6931472
        %v549 = vld [vmem:[%s358] sm:$0xff]
        %v550 = vmul.f32 %v548, %v549
        %551 = vadd.xlane.f32.xlu0 %v550
        %v552 = vpop.xlane.xlu0 %551
        %v553 = vld [vmem:[#allocation4] sm:$0x1]
        %v554 = vrot.slane %v552, 4
        %v555 = vadd.f32 %v552, %v554
        %v556 = vrot.slane %v555, 2
        %v557 = vadd.f32 %v555, %v556
        %v558 = vrot.slane %v557, 1
        %v559 = vadd.f32 %v557, %v558
        %v560 = vsub.f32 %v553, %v559
        %vm561 = vcmask 0
        %562 = vst.msk [vmem:[#allocation4] sm:$0x1] %vm561, %v560
      $region48: #{etm_forward.3} parent=35 // pred_fallthru
        _
      %p563 = pnand %p499, %p372
      %p564 = pneg %p563
      // Predicated region
      $region49: #{etm_forward.3} parent=35 // pred_check
        _
      $region50: #{etm_forward.3} parent=35 // pred_check_branch
        %566 = sbr.rel (%p563) target = $region52
      $region51: #{etm_forward.3} parent=35 // pred_region
        %v567 = vld [vmem:[#allocation4] sm:$0x1]
        %v568 = vmul.f32 %v567, 0.125
        %v570 = vperm.slane %v568, 0
        %571 = vset.pattern.permute.xlu0 0
        %572 = vperm.xlu0 %571, %v570
        %v573 = vpop.permute.xlu0 %572
        %575 = vst [vmem:[%s367] sm:$0xff] %v573
      $region52: #{etm_forward.3} parent=35 // pred_fallthru
        _
      %p576 = scmp.lt.s32.totalorder %s35, 1
      %s577 = scalar_select %p576, %s35, 1
      %s578 = smul.addr %s577, 8
      %s579 = scalar_lea.vmem %s6, %s578
      // Predicated region
      $region53: #{etm_forward.3} parent=35 // pred_check
        %p580 = pneg %p192
      $region54: #{etm_forward.3} parent=35 // pred_check_branch
        %582 = sbr.rel (%p580) target = $region56
      $region55: #{etm_forward.3} parent=35 // pred_region
        _
      $region56: #{etm_forward.3} parent=35 // pred_fallthru
        _
    $region36: #{etm_forward.3} parent=5 // pred_fallthru
      _
    %p583 = scmp.le.s32.totalorder 2, %s25
    // Predicated region
    $region57: #{etm_forward.3} parent=5 // pred_check
      %p584 = pneg %p583
    $region58: #{etm_forward.3} parent=5 // pred_check_branch
      %586 = sbr.rel (%p584) target = $region60
    $region59: #{etm_forward.3} parent=5 // pred_region
      %s587 = ssub.s32 %s25, 2
      // Predicated region
      $region61: #{etm_forward.3} parent=59 // pred_check
        %p588 = pneg %p198
      $region62: #{etm_forward.3} parent=59 // pred_check_branch
        %590 = sbr.rel (%p588) target = $region64
      $region63: #{etm_forward.3} parent=59 // pred_region
        %p591 = scmp.lt.s32.totalorder %s38, 1
        %s592 = scalar_select %p591, %s38, 1
        %s593 = smul.addr %s592, 8
        %s594 = scalar_lea.vmem %s6, %s593
      $region64: #{etm_forward.3} parent=59 // pred_fallthru
        _
    $region60: #{etm_forward.3} parent=5 // pred_fallthru
      _
  $region6: #{etm_forward.3} parent=0 // loop_footer
    %s29 = sadd.s32 1, %s25
  $region7: #{etm_forward.3} parent=0 // loop_footer_branch
    %24 = sbr.rel target = $region3
  $region8: #{etm_forward.3} parent=0 // loop_exit
    _

</llo_original>
